<compile_context>
chip_gen: v7x
topology: tpu7x:2x2x1
jax: 0.10.0
libtpu: 0.0.40
codegen_flags: <defaults>
</compile_context>

<pallas_src>
import functools

import jax
import jax.numpy as jnp
from jax.experimental import pallas as pl
from jax.experimental.pallas import tpu as pltpu


# ---------------------------------------------------------------------------
# Kernel: the whole encoder+decoder fused, one grid step per batch tile.
# ---------------------------------------------------------------------------
def _autoencoder_kernel(x_ref,
                        w1, b1, w2, b2, w3, b3,
                        w4, b4, w5, b5, w6, b6,
                        o_ref, *, mxu_dtype):
    def dense(h, w_ref, b_ref):
        # MXU matmul in mxu_dtype (bf16) with f32 accumulation; bias add and
        # ReLU run in f32 on the VPU.
        return jnp.dot(h.astype(mxu_dtype), w_ref[...],
                       preferred_element_type=jnp.float32) + b_ref[...]

    h = x_ref[...].astype(jnp.float32)
    # encoder
    h = jnp.maximum(dense(h, w1, b1), 0.0)
    h = jnp.maximum(dense(h, w2, b2), 0.0)
    h = jnp.maximum(dense(h, w3, b3), 0.0)
    # decoder
    h = jnp.maximum(dense(h, w4, b4), 0.0)
    h = jnp.maximum(dense(h, w5, b5), 0.0)
    h = dense(h, w6, b6)            # final layer: no activation
    o_ref[...] = h.astype(o_ref.dtype)


# ---------------------------------------------------------------------------
# Helpers
# ---------------------------------------------------------------------------
def _round_up(x, m):
    return ((x + m - 1) // m) * m


def _block_diag(w, f):
    """f copies of w on the block diagonal: (K, N) -> (f*K, f*N)."""
    if f == 1:
        return w
    k, n = w.shape
    zero = jnp.zeros((k, n), w.dtype)
    return jnp.block([[w if j == i else zero for j in range(f)]
                      for i in range(f)])


def _chip_properties():
    """Heuristic (mxu_width, tensorcores_per_device); conservative fallback."""
    mxu, num_tc = 128, 1
    try:
        kind = jax.devices()[0].device_kind.lower()
    except Exception:
        kind = ""
    if any(t in kind for t in ("v6", "trillium", "v7")):
        mxu = 256                    # 256x256 MXU -> lane fold is pass-neutral
    if any(t in kind for t in ("v4", "v5p", "v7")):
        num_tc = 2                   # megacore / dual TensorCore devices
    return mxu, num_tc


def _prepare_folded_params(params, f, mxu_dtype):
    """Fold + cast weights ONCE (hoisted out of the per-call path)."""
    flat = []
    for w, b in params:
        wf = _block_diag(w.astype(mxu_dtype), f)
        bf_ = jnp.tile(b.astype(jnp.float32), (1, f))
        flat.append(wf)
        flat.append(bf_)
    return flat


# ---------------------------------------------------------------------------
# Forward builder
# ---------------------------------------------------------------------------
def build_autoencoder_forward(params, *, batch_tile=2048,
                              mxu_dtype=jnp.bfloat16, lane_fold=None):
    """params: list of (W, b), W=(in,out), b=(1,out).  Returns forward(x)."""
    D = params[0][0].shape[0]
    mxu, num_tc = _chip_properties()

    # Lane-dense fold only on wide-MXU chips (perf review: v5e regression).
    if lane_fold is None:
        lane_fold = mxu >= 256
    f = 128 // D if (lane_fold and D < 128 and 128 % D == 0) else 1
    Df = D * f

    flat = _prepare_folded_params(params, f, mxu_dtype)   # hoisted: done once
    kernel = functools.partial(_autoencoder_kernel, mxu_dtype=mxu_dtype)

    # Single-buffer the resident weights if this JAX supports pipeline_mode.
    state = {"single_buffer_weights": hasattr(pl, "Buffered")}

    def _call(xf, tile_f, steps, single_buffer):
        if single_buffer:
            def w_spec(a):
                return pl.BlockSpec(a.shape, lambda i: (0, 0),
                                    pipeline_mode=pl.Buffered(1))
        else:
            def w_spec(a):
                return pl.BlockSpec(a.shape, lambda i: (0, 0))

        in_specs = [pl.BlockSpec((tile_f, Df), lambda i: (i, 0))]
        in_specs += [w_spec(a) for a in flat]
        out_spec = pl.BlockSpec((tile_f, Df), lambda i: (i, 0))

        return pl.pallas_call(
            kernel,
            out_shape=jax.ShapeDtypeStruct((steps * tile_f, Df), xf.dtype),
            grid_spec=pltpu.PrefetchScalarGridSpec(
                num_scalar_prefetch=0,
                grid=(steps,),
                in_specs=in_specs,
                out_specs=out_spec,
            ),
            compiler_params=pltpu.CompilerParams(
                dimension_semantics=("parallel",),
                vmem_limit_bytes=32 * 1024 * 1024),
        )(xf, *flat)

    def forward(x):
        B, D_in = x.shape
        assert D_in == D, f"expected input dim {D}, got {D_in}"

        # ----- tiling -----
        Bf = pl.cdiv(B, f)                       # folded rows needed
        tile_f = max(8, batch_tile // f)         # folded rows per grid step
        tile_f = min(tile_f, _round_up(Bf, 8))   # never larger than the data
        if num_tc >= 2:
            # Even step count so both TensorCores get equal work.
            steps = max(2, _round_up(pl.cdiv(Bf, tile_f), 2))
            tile_f = _round_up(pl.cdiv(Bf, steps), 8)
            steps = max(2, _round_up(pl.cdiv(Bf, tile_f), 2))
        else:
            steps = pl.cdiv(Bf, tile_f)
        Bf_pad = steps * tile_f
        Bp = Bf_pad * f                          # padded original-row count

        xp = jnp.pad(x, ((0, Bp - B), (0, 0))) if Bp != B else x
        xf = xp.reshape(Bf_pad, Df)              # row-major fold, no transpose

        if state["single_buffer_weights"]:
            try:
                out = _call(xf, tile_f, steps, True)
            except Exception:
                state["single_buffer_weights"] = False
                out = _call(xf, tile_f, steps, False)
        else:
            out = _call(xf, tile_f, steps, False)

        out = out.reshape(Bp, D)
        return out[:B] if Bp != B else out

    return forward


# ---------------------------------------------------------------------------
# Init + reference
# ---------------------------------------------------------------------------
def init_params(key, input_shape):
    """PyTorch-nn.Linear-like init; weights stored transposed as (in, out)."""
    dims = [input_shape, 256, 128, 32, 128, 256, input_shape]
    params = []
    for i in range(len(dims) - 1):
        fan_in, fan_out = dims[i], dims[i + 1]
        key, kw, kb = jax.random.split(key, 3)
        bound = 1.0 / jnp.sqrt(fan_in)
        w = jax.random.uniform(kw, (fan_in, fan_out), jnp.float32,
                               minval=-bound, maxval=bound)
        b = jax.random.uniform(kb, (1, fan_out), jnp.float32,
                               minval=-bound, maxval=bound)
        params.append((w, b))
    return params


def reference_forward(x, params, *, matmul_dtype=jnp.bfloat16):
    """Plain-JAX reference with the same mixed precision (bf16 MXU, f32 acc)."""
    h = x
    n = len(params)
    for i, (w, b) in enumerate(params):
        h = jnp.dot(h.astype(matmul_dtype), w.astype(matmul_dtype),
                    preferred_element_type=jnp.float32) + b
        if i != n - 1:
            h = jnp.maximum(h, 0.0)
    return h


if __name__ == "__main__":
    key = jax.random.PRNGKey(0)
    input_shape = 64      # in_features of the autoencoder
    batch = 8

    kx, kp = jax.random.split(key)
    x = jax.random.normal(kx, (batch, input_shape), jnp.float32)
    params = init_params(kp, input_shape)

    fwd = build_autoencoder_forward(params)   # weights folded/cast once here

    out = jax.block_until_ready(fwd(x))
    ref = reference_forward(x, params)
    assert out.shape == (batch, input_shape)
    assert jnp.allclose(out, ref, atol=1e-2, rtol=1e-2), "mismatch vs reference"

    # Ragged batch (exercises the zero-pad + fold + even-grid-step path).
    x2 = jax.random.normal(kx, (10, input_shape), jnp.float32)
    out2 = jax.block_until_ready(fwd(x2))
    ref2 = reference_forward(x2, params)
    assert out2.shape == x2.shape
    assert jnp.allclose(out2, ref2, atol=1e-2, rtol=1e-2), "ragged mismatch"

    print("KERNEL_OK")
</pallas_src>

<mosaic_0001>
module attributes {stable_mosaic.version = 11 : i64} {
  func.func @_autoencoder_kernel(%arg0: i32, %arg1: memref<8x64xf32, #tpu.memory_space<vmem>>, %arg2: memref<64x256xbf16, #tpu.memory_space<vmem>>, %arg3: memref<1x256xf32, #tpu.memory_space<vmem>>, %arg4: memref<256x128xbf16, #tpu.memory_space<vmem>>, %arg5: memref<1x128xf32, #tpu.memory_space<vmem>>, %arg6: memref<128x32xbf16, #tpu.memory_space<vmem>>, %arg7: memref<1x32xf32, #tpu.memory_space<vmem>>, %arg8: memref<32x128xbf16, #tpu.memory_space<vmem>>, %arg9: memref<1x128xf32, #tpu.memory_space<vmem>>, %arg10: memref<128x256xbf16, #tpu.memory_space<vmem>>, %arg11: memref<1x256xf32, #tpu.memory_space<vmem>>, %arg12: memref<256x64xbf16, #tpu.memory_space<vmem>>, %arg13: memref<1x64xf32, #tpu.memory_space<vmem>>, %arg14: memref<8x64xf32, #tpu.memory_space<vmem>>) attributes {dimension_semantics = [#tpu.dimension_semantics<parallel>], iteration_bounds = array<i64: 1>, scalar_prefetch = 0 : i64, scratch_operands = 0 : i64, tpu.core_type = #tpu.core_type<tc>, window_params = [{transform_indices = @transform_0, window_bounds = array<i64: 8, 64>}, {pipeline_mode = #tpu.pipeline_mode<synchronous>, transform_indices = @transform_1, window_bounds = array<i64: 64, 256>}, {pipeline_mode = #tpu.pipeline_mode<synchronous>, transform_indices = @transform_2, window_bounds = array<i64: 1, 256>}, {pipeline_mode = #tpu.pipeline_mode<synchronous>, transform_indices = @transform_3, window_bounds = array<i64: 256, 128>}, {pipeline_mode = #tpu.pipeline_mode<synchronous>, transform_indices = @transform_4, window_bounds = array<i64: 1, 128>}, {pipeline_mode = #tpu.pipeline_mode<synchronous>, transform_indices = @transform_5, window_bounds = array<i64: 128, 32>}, {pipeline_mode = #tpu.pipeline_mode<synchronous>, transform_indices = @transform_6, window_bounds = array<i64: 1, 32>}, {pipeline_mode = #tpu.pipeline_mode<synchronous>, transform_indices = @transform_7, window_bounds = array<i64: 32, 128>}, {pipeline_mode = #tpu.pipeline_mode<synchronous>, transform_indices = @transform_8, window_bounds = array<i64: 1, 128>}, {pipeline_mode = #tpu.pipeline_mode<synchronous>, transform_indices = @transform_9, window_bounds = array<i64: 128, 256>}, {pipeline_mode = #tpu.pipeline_mode<synchronous>, transform_indices = @transform_10, window_bounds = array<i64: 1, 256>}, {pipeline_mode = #tpu.pipeline_mode<synchronous>, transform_indices = @transform_11, window_bounds = array<i64: 256, 64>}, {pipeline_mode = #tpu.pipeline_mode<synchronous>, transform_indices = @transform_12, window_bounds = array<i64: 1, 64>}, {transform_indices = @transform_13, window_bounds = array<i64: 8, 64>}]} {
    %c0 = arith.constant 0 : index
    %c0_0 = arith.constant 0 : index
    %0 = vector.load %arg1[%c0, %c0_0] : memref<8x64xf32, #tpu.memory_space<vmem>>, vector<8x64xf32>
    %1 = arith.truncf %0 : vector<8x64xf32> to vector<8x64xbf16>
    %c0_1 = arith.constant 0 : index
    %c0_2 = arith.constant 0 : index
    %2 = vector.load %arg2[%c0_1, %c0_2] : memref<64x256xbf16, #tpu.memory_space<vmem>>, vector<64x256xbf16>
    %cst = arith.constant dense<0.000000e+00> : vector<8x256xf32>
    %3 = tpu.matmul %1, %2, %cst {dimension_numbers = #tpu.dot_dimension_numbers<[1], [0], [0], [1], [0, 0, 1, 1], [], []>} : vector<8x64xbf16>, vector<64x256xbf16>, vector<8x256xf32> -> vector<8x256xf32>
    %c0_3 = arith.constant 0 : index
    %c0_4 = arith.constant 0 : index
    %4 = vector.load %arg3[%c0_3, %c0_4] : memref<1x256xf32, #tpu.memory_space<vmem>>, vector<1x256xf32>
    %5 = vector.broadcast %4 : vector<1x256xf32> to vector<8x256xf32>
    %6 = arith.addf %3, %5 : vector<8x256xf32>
    %cst_5 = arith.constant 0.000000e+00 : f32
    %7 = vector.broadcast %cst_5 : f32 to vector<8x256xf32>
    %8 = arith.maximumf %6, %7 : vector<8x256xf32>
    %9 = arith.truncf %8 : vector<8x256xf32> to vector<8x256xbf16>
    %c0_6 = arith.constant 0 : index
    %c0_7 = arith.constant 0 : index
    %10 = vector.load %arg4[%c0_6, %c0_7] : memref<256x128xbf16, #tpu.memory_space<vmem>>, vector<256x128xbf16>
    %cst_8 = arith.constant dense<0.000000e+00> : vector<8x128xf32>
    %11 = tpu.matmul %9, %10, %cst_8 {dimension_numbers = #tpu.dot_dimension_numbers<[1], [0], [0], [1], [0, 0, 1, 1], [], []>} : vector<8x256xbf16>, vector<256x128xbf16>, vector<8x128xf32> -> vector<8x128xf32>
    %c0_9 = arith.constant 0 : index
    %c0_10 = arith.constant 0 : index
    %12 = vector.load %arg5[%c0_9, %c0_10] : memref<1x128xf32, #tpu.memory_space<vmem>>, vector<1x128xf32>
    %13 = vector.broadcast %12 : vector<1x128xf32> to vector<8x128xf32>
    %14 = arith.addf %11, %13 : vector<8x128xf32>
    %cst_11 = arith.constant 0.000000e+00 : f32
    %15 = vector.broadcast %cst_11 : f32 to vector<8x128xf32>
    %16 = arith.maximumf %14, %15 : vector<8x128xf32>
    %17 = arith.truncf %16 : vector<8x128xf32> to vector<8x128xbf16>
    %c0_12 = arith.constant 0 : index
    %c0_13 = arith.constant 0 : index
    %18 = vector.load %arg6[%c0_12, %c0_13] : memref<128x32xbf16, #tpu.memory_space<vmem>>, vector<128x32xbf16>
    %cst_14 = arith.constant dense<0.000000e+00> : vector<8x32xf32>
    %19 = tpu.matmul %17, %18, %cst_14 {dimension_numbers = #tpu.dot_dimension_numbers<[1], [0], [0], [1], [0, 0, 1, 1], [], []>} : vector<8x128xbf16>, vector<128x32xbf16>, vector<8x32xf32> -> vector<8x32xf32>
    %c0_15 = arith.constant 0 : index
    %c0_16 = arith.constant 0 : index
    %20 = vector.load %arg7[%c0_15, %c0_16] : memref<1x32xf32, #tpu.memory_space<vmem>>, vector<1x32xf32>
    %21 = vector.broadcast %20 : vector<1x32xf32> to vector<8x32xf32>
    %22 = arith.addf %19, %21 : vector<8x32xf32>
    %cst_17 = arith.constant 0.000000e+00 : f32
    %23 = vector.broadcast %cst_17 : f32 to vector<8x32xf32>
    %24 = arith.maximumf %22, %23 : vector<8x32xf32>
    %25 = arith.truncf %24 : vector<8x32xf32> to vector<8x32xbf16>
    %c0_18 = arith.constant 0 : index
    %c0_19 = arith.constant 0 : index
    %26 = vector.load %arg8[%c0_18, %c0_19] : memref<32x128xbf16, #tpu.memory_space<vmem>>, vector<32x128xbf16>
    %cst_20 = arith.constant dense<0.000000e+00> : vector<8x128xf32>
    %27 = tpu.matmul %25, %26, %cst_20 {dimension_numbers = #tpu.dot_dimension_numbers<[1], [0], [0], [1], [0, 0, 1, 1], [], []>} : vector<8x32xbf16>, vector<32x128xbf16>, vector<8x128xf32> -> vector<8x128xf32>
    %c0_21 = arith.constant 0 : index
    %c0_22 = arith.constant 0 : index
    %28 = vector.load %arg9[%c0_21, %c0_22] : memref<1x128xf32, #tpu.memory_space<vmem>>, vector<1x128xf32>
    %29 = vector.broadcast %28 : vector<1x128xf32> to vector<8x128xf32>
    %30 = arith.addf %27, %29 : vector<8x128xf32>
    %cst_23 = arith.constant 0.000000e+00 : f32
    %31 = vector.broadcast %cst_23 : f32 to vector<8x128xf32>
    %32 = arith.maximumf %30, %31 : vector<8x128xf32>
    %33 = arith.truncf %32 : vector<8x128xf32> to vector<8x128xbf16>
    %c0_24 = arith.constant 0 : index
    %c0_25 = arith.constant 0 : index
    %34 = vector.load %arg10[%c0_24, %c0_25] : memref<128x256xbf16, #tpu.memory_space<vmem>>, vector<128x256xbf16>
    %cst_26 = arith.constant dense<0.000000e+00> : vector<8x256xf32>
    %35 = tpu.matmul %33, %34, %cst_26 {dimension_numbers = #tpu.dot_dimension_numbers<[1], [0], [0], [1], [0, 0, 1, 1], [], []>} : vector<8x128xbf16>, vector<128x256xbf16>, vector<8x256xf32> -> vector<8x256xf32>
    %c0_27 = arith.constant 0 : index
    %c0_28 = arith.constant 0 : index
    %36 = vector.load %arg11[%c0_27, %c0_28] : memref<1x256xf32, #tpu.memory_space<vmem>>, vector<1x256xf32>
    %37 = vector.broadcast %36 : vector<1x256xf32> to vector<8x256xf32>
    %38 = arith.addf %35, %37 : vector<8x256xf32>
    %cst_29 = arith.constant 0.000000e+00 : f32
    %39 = vector.broadcast %cst_29 : f32 to vector<8x256xf32>
    %40 = arith.maximumf %38, %39 : vector<8x256xf32>
    %41 = arith.truncf %40 : vector<8x256xf32> to vector<8x256xbf16>
    %c0_30 = arith.constant 0 : index
    %c0_31 = arith.constant 0 : index
    %42 = vector.load %arg12[%c0_30, %c0_31] : memref<256x64xbf16, #tpu.memory_space<vmem>>, vector<256x64xbf16>
    %cst_32 = arith.constant dense<0.000000e+00> : vector<8x64xf32>
    %43 = tpu.matmul %41, %42, %cst_32 {dimension_numbers = #tpu.dot_dimension_numbers<[1], [0], [0], [1], [0, 0, 1, 1], [], []>} : vector<8x256xbf16>, vector<256x64xbf16>, vector<8x64xf32> -> vector<8x64xf32>
    %c0_33 = arith.constant 0 : index
    %c0_34 = arith.constant 0 : index
    %44 = vector.load %arg13[%c0_33, %c0_34] : memref<1x64xf32, #tpu.memory_space<vmem>>, vector<1x64xf32>
    %45 = vector.broadcast %44 : vector<1x64xf32> to vector<8x64xf32>
    %46 = arith.addf %43, %45 : vector<8x64xf32>
    %c0_35 = arith.constant 0 : index
    %c0_36 = arith.constant 0 : index
    %47 = vector.load %arg14[%c0_35, %c0_36] : memref<8x64xf32, #tpu.memory_space<vmem>>, vector<8x64xf32>
    tpu.vector_store %arg14[%c0_35, %c0_36], %46 {strides = array<i32>} : memref<8x64xf32, #tpu.memory_space<vmem>>, vector<8x64xf32>,
    return
  }
  func.func @transform_0(%arg0: i32) -> (i32, i32) {
    %c0_i32 = arith.constant 0 : i32
    %c0_i32_0 = arith.constant 0 : i32
    return %arg0, %c0_i32 : i32, i32
  }
  func.func @transform_1(%arg0: i32) -> (i32, i32) {
    %c0_i32 = arith.constant 0 : i32
    %c0_i32_0 = arith.constant 0 : i32
    %c0_i32_1 = arith.constant 0 : i32
    return %c0_i32, %c0_i32_0 : i32, i32
  }
  func.func @transform_2(%arg0: i32) -> (i32, i32) {
    %c0_i32 = arith.constant 0 : i32
    %c0_i32_0 = arith.constant 0 : i32
    %c0_i32_1 = arith.constant 0 : i32
    return %c0_i32, %c0_i32_0 : i32, i32
  }
  func.func @transform_3(%arg0: i32) -> (i32, i32) {
    %c0_i32 = arith.constant 0 : i32
    %c0_i32_0 = arith.constant 0 : i32
    %c0_i32_1 = arith.constant 0 : i32
    return %c0_i32, %c0_i32_0 : i32, i32
  }
  func.func @transform_4(%arg0: i32) -> (i32, i32) {
    %c0_i32 = arith.constant 0 : i32
    %c0_i32_0 = arith.constant 0 : i32
    %c0_i32_1 = arith.constant 0 : i32
    return %c0_i32, %c0_i32_0 : i32, i32
  }
  func.func @transform_5(%arg0: i32) -> (i32, i32) {
    %c0_i32 = arith.constant 0 : i32
    %c0_i32_0 = arith.constant 0 : i32
    %c0_i32_1 = arith.constant 0 : i32
    return %c0_i32, %c0_i32_0 : i32, i32
  }
  func.func @transform_6(%arg0: i32) -> (i32, i32) {
    %c0_i32 = arith.constant 0 : i32
    %c0_i32_0 = arith.constant 0 : i32
    %c0_i32_1 = arith.constant 0 : i32
    return %c0_i32, %c0_i32_0 : i32, i32
  }
  func.func @transform_7(%arg0: i32) -> (i32, i32) {
    %c0_i32 = arith.constant 0 : i32
    %c0_i32_0 = arith.constant 0 : i32
    %c0_i32_1 = arith.constant 0 : i32
    return %c0_i32, %c0_i32_0 : i32, i32
  }
  func.func @transform_8(%arg0: i32) -> (i32, i32) {
    %c0_i32 = arith.constant 0 : i32
    %c0_i32_0 = arith.constant 0 : i32
    %c0_i32_1 = arith.constant 0 : i32
    return %c0_i32, %c0_i32_0 : i32, i32
  }
  func.func @transform_9(%arg0: i32) -> (i32, i32) {
    %c0_i32 = arith.constant 0 : i32
    %c0_i32_0 = arith.constant 0 : i32
    %c0_i32_1 = arith.constant 0 : i32
    return %c0_i32, %c0_i32_0 : i32, i32
  }
  func.func @transform_10(%arg0: i32) -> (i32, i32) {
    %c0_i32 = arith.constant 0 : i32
    %c0_i32_0 = arith.constant 0 : i32
    %c0_i32_1 = arith.constant 0 : i32
    return %c0_i32, %c0_i32_0 : i32, i32
  }
  func.func @transform_11(%arg0: i32) -> (i32, i32) {
    %c0_i32 = arith.constant 0 : i32
    %c0_i32_0 = arith.constant 0 : i32
    %c0_i32_1 = arith.constant 0 : i32
    return %c0_i32, %c0_i32_0 : i32, i32
  }
  func.func @transform_12(%arg0: i32) -> (i32, i32) {
    %c0_i32 = arith.constant 0 : i32
    %c0_i32_0 = arith.constant 0 : i32
    %c0_i32_1 = arith.constant 0 : i32
    return %c0_i32, %c0_i32_0 : i32, i32
  }
  func.func @transform_13(%arg0: i32) -> (i32, i32) {
    %c0_i32 = arith.constant 0 : i32
    %c0_i32_0 = arith.constant 0 : i32
    return %arg0, %c0_i32 : i32, i32
  }
}

module attributes {stable_mosaic.version = 11 : i64} {
  func.func @_autoencoder_kernel(%arg0: i32, %arg1: memref<8x64xf32, #tpu.memory_space<vmem>>, %arg2: memref<64x256xbf16, #tpu.memory_space<vmem>>, %arg3: memref<1x256xf32, #tpu.memory_space<vmem>>, %arg4: memref<256x128xbf16, #tpu.memory_space<vmem>>, %arg5: memref<1x128xf32, #tpu.memory_space<vmem>>, %arg6: memref<128x32xbf16, #tpu.memory_space<vmem>>, %arg7: memref<1x32xf32, #tpu.memory_space<vmem>>, %arg8: memref<32x128xbf16, #tpu.memory_space<vmem>>, %arg9: memref<1x128xf32, #tpu.memory_space<vmem>>, %arg10: memref<128x256xbf16, #tpu.memory_space<vmem>>, %arg11: memref<1x256xf32, #tpu.memory_space<vmem>>, %arg12: memref<256x64xbf16, #tpu.memory_space<vmem>>, %arg13: memref<1x64xf32, #tpu.memory_space<vmem>>, %arg14: memref<8x64xf32, #tpu.memory_space<vmem>>) attributes {dimension_semantics = [#tpu.dimension_semantics<parallel>], iteration_bounds = array<i64: 1>, scalar_prefetch = 0 : i64, scratch_operands = 0 : i64, tpu.core_type = #tpu.core_type<tc>, window_params = [{transform_indices = @transform_0, window_bounds = array<i64: 8, 64>}, {pipeline_mode = #tpu.pipeline_mode<synchronous>, transform_indices = @transform_1, window_bounds = array<i64: 64, 256>}, {pipeline_mode = #tpu.pipeline_mode<synchronous>, transform_indices = @transform_2, window_bounds = array<i64: 1, 256>}, {pipeline_mode = #tpu.pipeline_mode<synchronous>, transform_indices = @transform_3, window_bounds = array<i64: 256, 128>}, {pipeline_mode = #tpu.pipeline_mode<synchronous>, transform_indices = @transform_4, window_bounds = array<i64: 1, 128>}, {pipeline_mode = #tpu.pipeline_mode<synchronous>, transform_indices = @transform_5, window_bounds = array<i64: 128, 32>}, {pipeline_mode = #tpu.pipeline_mode<synchronous>, transform_indices = @transform_6, window_bounds = array<i64: 1, 32>}, {pipeline_mode = #tpu.pipeline_mode<synchronous>, transform_indices = @transform_7, window_bounds = array<i64: 32, 128>}, {pipeline_mode = #tpu.pipeline_mode<synchronous>, transform_indices = @transform_8, window_bounds = array<i64: 1, 128>}, {pipeline_mode = #tpu.pipeline_mode<synchronous>, transform_indices = @transform_9, window_bounds = array<i64: 128, 256>}, {pipeline_mode = #tpu.pipeline_mode<synchronous>, transform_indices = @transform_10, window_bounds = array<i64: 1, 256>}, {pipeline_mode = #tpu.pipeline_mode<synchronous>, transform_indices = @transform_11, window_bounds = array<i64: 256, 64>}, {pipeline_mode = #tpu.pipeline_mode<synchronous>, transform_indices = @transform_12, window_bounds = array<i64: 1, 64>}, {transform_indices = @transform_13, window_bounds = array<i64: 8, 64>}]} {
    %c0 = arith.constant 0 : index
    %c0_0 = arith.constant 0 : index
    %0 = vector.load %arg1[%c0, %c0_0] : memref<8x64xf32, #tpu.memory_space<vmem>>, vector<8x64xf32>
    %1 = arith.truncf %0 : vector<8x64xf32> to vector<8x64xbf16>
    %c0_1 = arith.constant 0 : index
    %c0_2 = arith.constant 0 : index
    %2 = vector.load %arg2[%c0_1, %c0_2] : memref<64x256xbf16, #tpu.memory_space<vmem>>, vector<64x256xbf16>
    %cst = arith.constant dense<0.000000e+00> : vector<8x256xf32>
    %3 = tpu.matmul %1, %2, %cst {dimension_numbers = #tpu.dot_dimension_numbers<[1], [0], [0], [1], [0, 0, 1, 1], [], []>} : vector<8x64xbf16>, vector<64x256xbf16>, vector<8x256xf32> -> vector<8x256xf32>
    %c0_3 = arith.constant 0 : index
    %c0_4 = arith.constant 0 : index
    %4 = vector.load %arg3[%c0_3, %c0_4] : memref<1x256xf32, #tpu.memory_space<vmem>>, vector<1x256xf32>
    %5 = vector.broadcast %4 : vector<1x256xf32> to vector<8x256xf32>
    %6 = arith.addf %3, %5 : vector<8x256xf32>
    %cst_5 = arith.constant 0.000000e+00 : f32
    %7 = vector.broadcast %cst_5 : f32 to vector<8x256xf32>
    %8 = arith.maximumf %6, %7 : vector<8x256xf32>
    %9 = arith.truncf %8 : vector<8x256xf32> to vector<8x256xbf16>
    %c0_6 = arith.constant 0 : index
    %c0_7 = arith.constant 0 : index
    %10 = vector.load %arg4[%c0_6, %c0_7] : memref<256x128xbf16, #tpu.memory_space<vmem>>, vector<256x128xbf16>
    %cst_8 = arith.constant dense<0.000000e+00> : vector<8x128xf32>
    %11 = tpu.matmul %9, %10, %cst_8 {dimension_numbers = #tpu.dot_dimension_numbers<[1], [0], [0], [1], [0, 0, 1, 1], [], []>} : vector<8x256xbf16>, vector<256x128xbf16>, vector<8x128xf32> -> vector<8x128xf32>
    %c0_9 = arith.constant 0 : index
    %c0_10 = arith.constant 0 : index
    %12 = vector.load %arg5[%c0_9, %c0_10] : memref<1x128xf32, #tpu.memory_space<vmem>>, vector<1x128xf32>
    %13 = vector.broadcast %12 : vector<1x128xf32> to vector<8x128xf32>
    %14 = arith.addf %11, %13 : vector<8x128xf32>
    %cst_11 = arith.constant 0.000000e+00 : f32
    %15 = vector.broadcast %cst_11 : f32 to vector<8x128xf32>
    %16 = arith.maximumf %14, %15 : vector<8x128xf32>
    %17 = arith.truncf %16 : vector<8x128xf32> to vector<8x128xbf16>
    %c0_12 = arith.constant 0 : index
    %c0_13 = arith.constant 0 : index
    %18 = vector.load %arg6[%c0_12, %c0_13] : memref<128x32xbf16, #tpu.memory_space<vmem>>, vector<128x32xbf16>
    %cst_14 = arith.constant dense<0.000000e+00> : vector<8x32xf32>
    %19 = tpu.matmul %17, %18, %cst_14 {dimension_numbers = #tpu.dot_dimension_numbers<[1], [0], [0], [1], [0, 0, 1, 1], [], []>} : vector<8x128xbf16>, vector<128x32xbf16>, vector<8x32xf32> -> vector<8x32xf32>
    %c0_15 = arith.constant 0 : index
    %c0_16 = arith.constant 0 : index
    %20 = vector.load %arg7[%c0_15, %c0_16] : memref<1x32xf32, #tpu.memory_space<vmem>>, vector<1x32xf32>
    %21 = vector.broadcast %20 : vector<1x32xf32> to vector<8x32xf32>
    %22 = arith.addf %19, %21 : vector<8x32xf32>
    %cst_17 = arith.constant 0.000000e+00 : f32
    %23 = vector.broadcast %cst_17 : f32 to vector<8x32xf32>
    %24 = arith.maximumf %22, %23 : vector<8x32xf32>
    %25 = arith.truncf %24 : vector<8x32xf32> to vector<8x32xbf16>
    %c0_18 = arith.constant 0 : index
    %c0_19 = arith.constant 0 : index
    %26 = vector.load %arg8[%c0_18, %c0_19] : memref<32x128xbf16, #tpu.memory_space<vmem>>, vector<32x128xbf16>
    %cst_20 = arith.constant dense<0.000000e+00> : vector<8x128xf32>
    %27 = tpu.matmul %25, %26, %cst_20 {dimension_numbers = #tpu.dot_dimension_numbers<[1], [0], [0], [1], [0, 0, 1, 1], [], []>} : vector<8x32xbf16>, vector<32x128xbf16>, vector<8x128xf32> -> vector<8x128xf32>
    %c0_21 = arith.constant 0 : index
    %c0_22 = arith.constant 0 : index
    %28 = vector.load %arg9[%c0_21, %c0_22] : memref<1x128xf32, #tpu.memory_space<vmem>>, vector<1x128xf32>
    %29 = vector.broadcast %28 : vector<1x128xf32> to vector<8x128xf32>
    %30 = arith.addf %27, %29 : vector<8x128xf32>
    %cst_23 = arith.constant 0.000000e+00 : f32
    %31 = vector.broadcast %cst_23 : f32 to vector<8x128xf32>
    %32 = arith.maximumf %30, %31 : vector<8x128xf32>
    %33 = arith.truncf %32 : vector<8x128xf32> to vector<8x128xbf16>
    %c0_24 = arith.constant 0 : index
    %c0_25 = arith.constant 0 : index
    %34 = vector.load %arg10[%c0_24, %c0_25] : memref<128x256xbf16, #tpu.memory_space<vmem>>, vector<128x256xbf16>
    %cst_26 = arith.constant dense<0.000000e+00> : vector<8x256xf32>
    %35 = tpu.matmul %33, %34, %cst_26 {dimension_numbers = #tpu.dot_dimension_numbers<[1], [0], [0], [1], [0, 0, 1, 1], [], []>} : vector<8x128xbf16>, vector<128x256xbf16>, vector<8x256xf32> -> vector<8x256xf32>
    %c0_27 = arith.constant 0 : index
    %c0_28 = arith.constant 0 : index
    %36 = vector.load %arg11[%c0_27, %c0_28] : memref<1x256xf32, #tpu.memory_space<vmem>>, vector<1x256xf32>
    %37 = vector.broadcast %36 : vector<1x256xf32> to vector<8x256xf32>
    %38 = arith.addf %35, %37 : vector<8x256xf32>
    %cst_29 = arith.constant 0.000000e+00 : f32
    %39 = vector.broadcast %cst_29 : f32 to vector<8x256xf32>
    %40 = arith.maximumf %38, %39 : vector<8x256xf32>
    %41 = arith.truncf %40 : vector<8x256xf32> to vector<8x256xbf16>
    %c0_30 = arith.constant 0 : index
    %c0_31 = arith.constant 0 : index
    %42 = vector.load %arg12[%c0_30, %c0_31] : memref<256x64xbf16, #tpu.memory_space<vmem>>, vector<256x64xbf16>
    %cst_32 = arith.constant dense<0.000000e+00> : vector<8x64xf32>
    %43 = tpu.matmul %41, %42, %cst_32 {dimension_numbers = #tpu.dot_dimension_numbers<[1], [0], [0], [1], [0, 0, 1, 1], [], []>} : vector<8x256xbf16>, vector<256x64xbf16>, vector<8x64xf32> -> vector<8x64xf32>
    %c0_33 = arith.constant 0 : index
    %c0_34 = arith.constant 0 : index
    %44 = vector.load %arg13[%c0_33, %c0_34] : memref<1x64xf32, #tpu.memory_space<vmem>>, vector<1x64xf32>
    %45 = vector.broadcast %44 : vector<1x64xf32> to vector<8x64xf32>
    %46 = arith.addf %43, %45 : vector<8x64xf32>
    %c0_35 = arith.constant 0 : index
    %c0_36 = arith.constant 0 : index
    %47 = vector.load %arg14[%c0_35, %c0_36] : memref<8x64xf32, #tpu.memory_space<vmem>>, vector<8x64xf32>
    tpu.vector_store %arg14[%c0_35, %c0_36], %46 {strides = array<i32>} : memref<8x64xf32, #tpu.memory_space<vmem>>, vector<8x64xf32>,
    return
  }
  func.func @transform_0(%arg0: i32) -> (i32, i32) {
    %c0_i32 = arith.constant 0 : i32
    %c0_i32_0 = arith.constant 0 : i32
    return %arg0, %c0_i32 : i32, i32
  }
  func.func @transform_1(%arg0: i32) -> (i32, i32) {
    %c0_i32 = arith.constant 0 : i32
    %c0_i32_0 = arith.constant 0 : i32
    %c0_i32_1 = arith.constant 0 : i32
    return %c0_i32, %c0_i32_0 : i32, i32
  }
  func.func @transform_2(%arg0: i32) -> (i32, i32) {
    %c0_i32 = arith.constant 0 : i32
    %c0_i32_0 = arith.constant 0 : i32
    %c0_i32_1 = arith.constant 0 : i32
    return %c0_i32, %c0_i32_0 : i32, i32
  }
  func.func @transform_3(%arg0: i32) -> (i32, i32) {
    %c0_i32 = arith.constant 0 : i32
    %c0_i32_0 = arith.constant 0 : i32
    %c0_i32_1 = arith.constant 0 : i32
    return %c0_i32, %c0_i32_0 : i32, i32
  }
  func.func @transform_4(%arg0: i32) -> (i32, i32) {
    %c0_i32 = arith.constant 0 : i32
    %c0_i32_0 = arith.constant 0 : i32
    %c0_i32_1 = arith.constant 0 : i32
    return %c0_i32, %c0_i32_0 : i32, i32
  }
  func.func @transform_5(%arg0: i32) -> (i32, i32) {
    %c0_i32 = arith.constant 0 : i32
    %c0_i32_0 = arith.constant 0 : i32
    %c0_i32_1 = arith.constant 0 : i32
    return %c0_i32, %c0_i32_0 : i32, i32
  }
  func.func @transform_6(%arg0: i32) -> (i32, i32) {
    %c0_i32 = arith.constant 0 : i32
    %c0_i32_0 = arith.constant 0 : i32
    %c0_i32_1 = arith.constant 0 : i32
    return %c0_i32, %c0_i32_0 : i32, i32
  }
  func.func @transform_7(%arg0: i32) -> (i32, i32) {
    %c0_i32 = arith.constant 0 : i32
    %c0_i32_0 = arith.constant 0 : i32
    %c0_i32_1 = arith.constant 0 : i32
    return %c0_i32, %c0_i32_0 : i32, i32
  }
  func.func @transform_8(%arg0: i32) -> (i32, i32) {
    %c0_i32 = arith.constant 0 : i32
    %c0_i32_0 = arith.constant 0 : i32
    %c0_i32_1 = arith.constant 0 : i32
    return %c0_i32, %c0_i32_0 : i32, i32
  }
  func.func @transform_9(%arg0: i32) -> (i32, i32) {
    %c0_i32 = arith.constant 0 : i32
    %c0_i32_0 = arith.constant 0 : i32
    %c0_i32_1 = arith.constant 0 : i32
    return %c0_i32, %c0_i32_0 : i32, i32
  }
  func.func @transform_10(%arg0: i32) -> (i32, i32) {
    %c0_i32 = arith.constant 0 : i32
    %c0_i32_0 = arith.constant 0 : i32
    %c0_i32_1 = arith.constant 0 : i32
    return %c0_i32, %c0_i32_0 : i32, i32
  }
  func.func @transform_11(%arg0: i32) -> (i32, i32) {
    %c0_i32 = arith.constant 0 : i32
    %c0_i32_0 = arith.constant 0 : i32
    %c0_i32_1 = arith.constant 0 : i32
    return %c0_i32, %c0_i32_0 : i32, i32
  }
  func.func @transform_12(%arg0: i32) -> (i32, i32) {
    %c0_i32 = arith.constant 0 : i32
    %c0_i32_0 = arith.constant 0 : i32
    %c0_i32_1 = arith.constant 0 : i32
    return %c0_i32, %c0_i32_0 : i32, i32
  }
  func.func @transform_13(%arg0: i32) -> (i32, i32) {
    %c0_i32 = arith.constant 0 : i32
    %c0_i32_0 = arith.constant 0 : i32
    return %arg0, %c0_i32 : i32, i32
  }
}

</mosaic_0001>

<llo_original>
// kernel: tpu_custom_call.1
$region0: #{tpu_custom_call.1}
  #allocation0 [shape = 'u32[]', space=smem, size = 0x4, offset = 0x4, fixed_abs, tag = 'smem constant byte address 0x4 - core index']
  #allocation1 [shape = 'u32[144,128]{1,0:T(1,128)}', space=vmem, size = 0x12000, scoped, tag = 'internal scratch']
  %s0 = inlined_call_operand.hbm [shape: f32[8,64], index: 0, kind: input, shape index: {}]
  %s1 = inlined_call_operand.hbm [shape: bf16[64,256], index: 1, kind: input, shape index: {}]
  %s2 = inlined_call_operand.vmem [shape: f32[1,256], index: 2, kind: input, shape index: {}]
  %s3 = inlined_call_operand.vmem [shape: bf16[256,128], index: 3, kind: input, shape index: {}]
  %s4 = inlined_call_operand.hbm [shape: f32[1,128], index: 4, kind: input, shape index: {}]
  %s5 = inlined_call_operand.vmem [shape: bf16[128,32], index: 5, kind: input, shape index: {}]
  %s6 = inlined_call_operand.vmem [shape: f32[1,32], index: 6, kind: input, shape index: {}]
  %s7 = inlined_call_operand.vmem [shape: bf16[32,128], index: 7, kind: input, shape index: {}]
  %s8 = inlined_call_operand.vmem [shape: f32[1,128], index: 8, kind: input, shape index: {}]
  %s9 = inlined_call_operand.vmem [shape: bf16[128,256], index: 9, kind: input, shape index: {}]
  %s10 = inlined_call_operand.vmem [shape: f32[1,256], index: 10, kind: input, shape index: {}]
  %s11 = inlined_call_operand.vmem [shape: bf16[256,64], index: 11, kind: input, shape index: {}]
  %s12 = inlined_call_operand.vmem [shape: f32[1,64], index: 12, kind: input, shape index: {}]
  %s13 = inlined_call_operand.hbm [shape: f32[8,64], index: 13, kind: output, shape index: {}]
  %s14 = sld [smem:[#allocation0]]
  $region74: #{tpu_custom_call.1} parent=0
    _
  %s16 = ssub.s32 1, %s14
  %s17 = scalar_select 0, %s16, %s14
  $region1: #{tpu_custom_call.1} parent=0
    #allocation2 [shape = 'u8[4096]{0}', space=vmem, size = 0x1000, scoped, tag = 'input window, operand 0, single buffered']
    #allocation3 [shape = 's32[1]{0}', space=sflag, size = 0x4, scoped, tag = 'scoped memory for tpu_custom_call.1']
    #allocation4 [shape = 's32[1]{0}', space=sflag, size = 0x4, scoped, tag = 'scoped memory for tpu_custom_call.1']
    #allocation5 [shape = 'u8[32768]{0}', space=vmem, size = 0x8000, scoped, tag = 'input window, operand 1, single buffered']
    #allocation6 [shape = 's32[1]{0}', space=sflag, size = 0x4, scoped, tag = 'scoped memory for tpu_custom_call.1']
    #allocation7 [shape = 'u8[512]{0}', space=vmem, size = 0x400, scoped, tag = 'input window, operand 4, single buffered']
    #allocation8 [shape = 'u8[4096]{0}', space=vmem, size = 0x1000, scoped, tag = 'output window, operand 0, single buffered']
    %18 = vsyncpa [#allocation3], 0
    %19 = vsyncpa [#allocation6], 0
    %20 = vsyncpa [#allocation4], 0
    // Predicated region
    $region2: #{tpu_custom_call.1} parent=1 // pred_check
      _
    $region3: #{tpu_custom_call.1} parent=1 // pred_check_branch
      %22 = sbr.rel (0) target = $region5
    $region4: #{tpu_custom_call.1} parent=1 // pred_region
      %s24 = ssub.s32 128, 128
      %25 = vsyncadd [#allocation3], %s24
      %s27 = sshll.u32 [#allocation2], 4
      %s28 = int_to_ptr.vmem [resolvable:$true] %s27
      %30 = dma.hbm_to_vmem [thread:$0]  %s0, 128, %s28, [#allocation3]
    $region5: #{tpu_custom_call.1} parent=1 // pred_fallthru
      _
    // Predicated region
    $region6: #{tpu_custom_call.1} parent=1 // pred_check
      _
    $region7: #{tpu_custom_call.1} parent=1 // pred_check_branch
      %32 = sbr.rel (0) target = $region9
    $region8: #{tpu_custom_call.1} parent=1 // pred_region
      %s34 = ssub.s32 1024, 1024
      %35 = vsyncadd [#allocation6], %s34
      %s36 = sshll.u32 [#allocation5], 4
      %s37 = int_to_ptr.vmem [resolvable:$true] %s36
      %42 = dma.hbm_to_vmem [thread:$0]  %s1, 1024, %s37, [#allocation6], 128, 128, 8
    $region9: #{tpu_custom_call.1} parent=1 // pred_fallthru
      _
    // Predicated region
    $region10: #{tpu_custom_call.1} parent=1 // pred_check
      _
    $region11: #{tpu_custom_call.1} parent=1 // pred_check_branch
      %44 = sbr.rel (0) target = $region13
    $region12: #{tpu_custom_call.1} parent=1 // pred_region
      _
    $region13: #{tpu_custom_call.1} parent=1 // pred_fallthru
      _
    // Predicated region
    $region14: #{tpu_custom_call.1} parent=1 // pred_check
      _
    $region15: #{tpu_custom_call.1} parent=1 // pred_check_branch
      %46 = sbr.rel (0) target = $region17
    $region16: #{tpu_custom_call.1} parent=1 // pred_region
      _
    $region17: #{tpu_custom_call.1} parent=1 // pred_fallthru
      _
    // Predicated region
    $region18: #{tpu_custom_call.1} parent=1 // pred_check
      _
    $region19: #{tpu_custom_call.1} parent=1 // pred_check_branch
      %48 = sbr.rel (0) target = $region21
    $region20: #{tpu_custom_call.1} parent=1 // pred_region
      %s50 = ssub.s32 16, 16
      %51 = vsyncadd [#allocation6], %s50
      %s53 = sshll.u32 [#allocation7], 4
      %s54 = int_to_ptr.vmem [resolvable:$true] %s53
      %56 = dma.hbm_to_vmem [thread:$0]  %s4, 16, %s54, [#allocation6]
    $region21: #{tpu_custom_call.1} parent=1 // pred_fallthru
      _
    // Predicated region
    $region22: #{tpu_custom_call.1} parent=1 // pred_check
      _
    $region23: #{tpu_custom_call.1} parent=1 // pred_check_branch
      %58 = sbr.rel (0) target = $region25
    $region24: #{tpu_custom_call.1} parent=1 // pred_region
      _
    $region25: #{tpu_custom_call.1} parent=1 // pred_fallthru
      _
    // Predicated region
    $region26: #{tpu_custom_call.1} parent=1 // pred_check
      _
    $region27: #{tpu_custom_call.1} parent=1 // pred_check_branch
      %60 = sbr.rel (0) target = $region29
    $region28: #{tpu_custom_call.1} parent=1 // pred_region
      _
    $region29: #{tpu_custom_call.1} parent=1 // pred_fallthru
      _
    // Predicated region
    $region30: #{tpu_custom_call.1} parent=1 // pred_check
      _
    $region31: #{tpu_custom_call.1} parent=1 // pred_check_branch
      %62 = sbr.rel (0) target = $region33
    $region32: #{tpu_custom_call.1} parent=1 // pred_region
      _
    $region33: #{tpu_custom_call.1} parent=1 // pred_fallthru
      _
    // Predicated region
    $region34: #{tpu_custom_call.1} parent=1 // pred_check
      _
    $region35: #{tpu_custom_call.1} parent=1 // pred_check_branch
      %64 = sbr.rel (0) target = $region37
    $region36: #{tpu_custom_call.1} parent=1 // pred_region
      _
    $region37: #{tpu_custom_call.1} parent=1 // pred_fallthru
      _
    // Predicated region
    $region38: #{tpu_custom_call.1} parent=1 // pred_check
      _
    $region39: #{tpu_custom_call.1} parent=1 // pred_check_branch
      %66 = sbr.rel (0) target = $region41
    $region40: #{tpu_custom_call.1} parent=1 // pred_region
      _
    $region41: #{tpu_custom_call.1} parent=1 // pred_fallthru
      _
    // Predicated region
    $region42: #{tpu_custom_call.1} parent=1 // pred_check
      _
    $region43: #{tpu_custom_call.1} parent=1 // pred_check_branch
      %68 = sbr.rel (0) target = $region45
    $region44: #{tpu_custom_call.1} parent=1 // pred_region
      _
    $region45: #{tpu_custom_call.1} parent=1 // pred_fallthru
      _
    // Predicated region
    $region46: #{tpu_custom_call.1} parent=1 // pred_check
      _
    $region47: #{tpu_custom_call.1} parent=1 // pred_check_branch
      %70 = sbr.rel (0) target = $region49
    $region48: #{tpu_custom_call.1} parent=1 // pred_region
      _
    $region49: #{tpu_custom_call.1} parent=1 // pred_fallthru
      _
    // Predicated region
    $region50: #{tpu_custom_call.1} parent=1 // pred_check
      _
    $region51: #{tpu_custom_call.1} parent=1 // pred_check_branch
      %72 = sbr.rel (0) target = $region53
    $region52: #{tpu_custom_call.1} parent=1 // pred_region
      _
    $region53: #{tpu_custom_call.1} parent=1 // pred_fallthru
      _
    // Predicated region
    $region54: #{tpu_custom_call.1} parent=1 // pred_check
      _
    $region55: #{tpu_custom_call.1} parent=1 // pred_check_branch
      %74 = sbr.rel (0) target = $region57
    $region56: #{tpu_custom_call.1} parent=1 // pred_region
      %75 = dma.done [#allocation3], 128
    $region57: #{tpu_custom_call.1} parent=1 // pred_fallthru
      _
    // Predicated region
    $region58: #{tpu_custom_call.1} parent=1 // pred_check
      _
    $region59: #{tpu_custom_call.1} parent=1 // pred_check_branch
      %77 = sbr.rel (0) target = $region61
    $region60: #{tpu_custom_call.1} parent=1 // pred_region
      %78 = dma.done [#allocation6], 1024
    $region61: #{tpu_custom_call.1} parent=1 // pred_fallthru
      _
    // Predicated region
    $region62: #{tpu_custom_call.1} parent=1 // pred_check
      _
    $region63: #{tpu_custom_call.1} parent=1 // pred_check_branch
      %80 = sbr.rel (0) target = $region65
    $region64: #{tpu_custom_call.1} parent=1 // pred_region
      %81 = dma.done [#allocation6], 16
    $region65: #{tpu_custom_call.1} parent=1 // pred_fallthru
      _
    %v83 = vld [vmem:[#allocation2] sm:$0xff]
    %v84 = vpack.c.bf16 %v83, %v83
    %v85 = vld [vmem:[#allocation5] sm:$0xff]
    %v86 = vld [vmem:[#allocation5 + $0x8] sm:$0xff]
    %v87 = vld [vmem:[#allocation5 + $0x10] sm:$0xff]
    %v88 = vld [vmem:[#allocation5 + $0x18] sm:$0xff]
    %v89 = vld [vmem:[#allocation5 + $0x20] sm:$0xff]
    %v90 = vld [vmem:[#allocation5 + $0x28] sm:$0xff]
    %v91 = vld [vmem:[#allocation5 + $0x30] sm:$0xff]
    %v92 = vld [vmem:[#allocation5 + $0x38] sm:$0xff]
    %v93 = vld [vmem:[%s2] sm:$0x3]
    %v95 = vlaneseq
    %v96 = vshrl.u32 %v95, 7
    %v97 = vsub.s32 0, %v96
    %v98 = vrot.slane %v93, %v97
    %v99 = vlaneseq
    %v100 = vshrl.u32 %v99, 7
    %v101 = vsub.s32 1, %v100
    %v102 = vrot.slane %v93, %v101
    %v113 = vunpack.c.l.b16 %v85
    %v114 = vunpack.c.h.b16 %v85
    %v115 = vunpack.c.l.b16 %v86
    %v116 = vunpack.c.h.b16 %v86
    %v117 = vunpack.c.l.b16 %v87
    %v118 = vunpack.c.h.b16 %v87
    %v119 = vunpack.c.l.b16 %v88
    %v120 = vunpack.c.h.b16 %v88
    %v121 = vunpack.c.l.b16 %v89
    %v122 = vunpack.c.h.b16 %v89
    %v123 = vunpack.c.l.b16 %v90
    %v124 = vunpack.c.h.b16 %v90
    %v125 = vunpack.c.l.b16 %v91
    %v126 = vunpack.c.h.b16 %v91
    %v127 = vunpack.c.l.b16 %v92
    %v128 = vunpack.c.h.b16 %v92
    %v129 = vpack.c.b16 %v115, %v113
    %v130 = vpack.c.b16 %v116, %v114
    %v131 = vpack.c.b16 %v119, %v117
    %v132 = vpack.c.b16 %v120, %v118
    %v133 = vpack.c.b16 %v123, %v121
    %v134 = vpack.c.b16 %v124, %v122
    %v135 = vpack.c.b16 %v127, %v125
    %v136 = vpack.c.b16 %v128, %v126
    %vm145 = vcmask 523264
    %v147 = vsel %vm145, %v84, 0
    %149 = vmatprep.subr.bf16.mxu0 %v130
    %150 = vmatpush1.bf16.msra.mxu0 %v129
    %151 = vmatprep.subr.bf16.mxu0 %v132
    %152 = vmatpush1.bf16.msra.mxu0 %v131
    %153 = vmatprep.subr.bf16.mxu0 %v134
    %154 = vmatpush1.bf16.msra.mxu0 %v133
    %155 = vmatprep.subr.bf16.mxu0 %v136
    %156 = vmatpush1.bf16.msra.mxu0 %v135
    %157 = vmatprep.subr.bf16.mxu0 0
    %158 = vmatpush1.bf16.msra.mxu0 0
    %159 = vmatprep.subr.bf16.mxu0 0
    %160 = vmatpush1.bf16.msra.mxu0 0
    %161 = vmatprep.subr.bf16.mxu0 0
    %162 = vmatpush1.bf16.msra.mxu0 0
    %163 = vmatprep.subr.bf16.mxu0 0
    %164 = vmatpush1.bf16.msra.mxu0 0
    %165 = vmatprep.subr.bf16.mxu0 0
    %166 = vmatpush1.bf16.msra.mxu0 0
    %167 = vmatprep.subr.bf16.mxu0 0
    %168 = vmatpush1.bf16.msra.mxu0 0
    %169 = vmatprep.subr.bf16.mxu0 0
    %170 = vmatpush1.bf16.msra.mxu0 0
    %171 = vmatprep.subr.bf16.mxu0 0
    %172 = vmatpush1.bf16.msra.mxu0 0
    %173 = vmatprep.subr.bf16.mxu0 0
    %174 = vmatpush1.bf16.msra.mxu0 0
    %175 = vmatprep.subr.bf16.mxu0 0
    %176 = vmatpush1.bf16.msra.mxu0 0
    %177 = vmatprep.subr.bf16.mxu0 0
    %178 = vmatpush1.bf16.msra.mxu0 0
    %179 = vmatprep.subr.bf16.mxu0 0
    %180 = vmatpush1.bf16.msra.mxu0 0
    %181 = vmatprep.mubr.bf16.mxu0 0
    %182 = vmatmul.mubr.bf16.gmra.mrb[0].mxu0 %v147
    %v183 = vpop.f32.mrb[0].mxu0
    %v184 = vadd.f32 %v98, %v183
    %v185 = vpop.f32.mrb[0].mxu0
    %v186 = vadd.f32 %v102, %v185
    %v187 = vpop.f32.mrb[0].mxu0
    %v188 = vpop.f32.mrb[0].mxu0
    %189 = vdwg.mxu0
    %v190 = vmax.f32 %v184, 0.0
    %v191 = vmax.f32 %v186, 0.0
    %v192 = vpack.c.bf16 %v190, %v190
    %v193 = vpack.c.bf16 %v191, %v191
    %v194 = vld [vmem:[%s3] sm:$0xf]
    %v195 = vld [vmem:[%s3 + $0x4] sm:$0xf]
    %v196 = vld [vmem:[%s3 + $0x8] sm:$0xf]
    %v197 = vld [vmem:[%s3 + $0xc] sm:$0xf]
    %v198 = vld [vmem:[%s3 + $0x10] sm:$0xf]
    %v199 = vld [vmem:[%s3 + $0x14] sm:$0xf]
    %v200 = vld [vmem:[%s3 + $0x18] sm:$0xf]
    %v201 = vld [vmem:[%s3 + $0x1c] sm:$0xf]
    %v202 = vld [vmem:[%s3 + $0x20] sm:$0xf]
    %v203 = vld [vmem:[%s3 + $0x24] sm:$0xf]
    %v204 = vld [vmem:[%s3 + $0x28] sm:$0xf]
    %v205 = vld [vmem:[%s3 + $0x2c] sm:$0xf]
    %v206 = vld [vmem:[%s3 + $0x30] sm:$0xf]
    %v207 = vld [vmem:[%s3 + $0x34] sm:$0xf]
    %v208 = vld [vmem:[%s3 + $0x38] sm:$0xf]
    %v209 = vld [vmem:[%s3 + $0x3c] sm:$0xf]
    %v210 = vld [vmem:[%s3 + $0x40] sm:$0xf]
    %v211 = vld [vmem:[%s3 + $0x44] sm:$0xf]
    %v212 = vld [vmem:[%s3 + $0x48] sm:$0xf]
    %v213 = vld [vmem:[%s3 + $0x4c] sm:$0xf]
    %v214 = vld [vmem:[%s3 + $0x50] sm:$0xf]
    %v215 = vld [vmem:[%s3 + $0x54] sm:$0xf]
    %v216 = vld [vmem:[%s3 + $0x58] sm:$0xf]
    %v217 = vld [vmem:[%s3 + $0x5c] sm:$0xf]
    %v218 = vld [vmem:[%s3 + $0x60] sm:$0xf]
    %v219 = vld [vmem:[%s3 + $0x64] sm:$0xf]
    %v220 = vld [vmem:[%s3 + $0x68] sm:$0xf]
    %v221 = vld [vmem:[%s3 + $0x6c] sm:$0xf]
    %v222 = vld [vmem:[%s3 + $0x70] sm:$0xf]
    %v223 = vld [vmem:[%s3 + $0x74] sm:$0xf]
    %v224 = vld [vmem:[%s3 + $0x78] sm:$0xf]
    %v225 = vld [vmem:[%s3 + $0x7c] sm:$0xf]
    %v226 = vld [vmem:[#allocation7] sm:$0x1]
    %v228 = vlaneseq
    %v229 = vshrl.u32 %v228, 7
    %v230 = vsub.s32 0, %v229
    %v231 = vrot.slane %v226, %v230
    %v265 = vunpack.c.l.b16 %v194
    %v266 = vunpack.c.l.b16 %v195
    %v267 = vunpack.c.l.b16 %v196
    %v268 = vunpack.c.l.b16 %v197
    %v269 = vunpack.c.l.b16 %v198
    %v270 = vunpack.c.l.b16 %v199
    %v271 = vunpack.c.l.b16 %v200
    %v272 = vunpack.c.l.b16 %v201
    %v273 = vunpack.c.l.b16 %v202
    %v274 = vunpack.c.l.b16 %v203
    %v275 = vunpack.c.l.b16 %v204
    %v276 = vunpack.c.l.b16 %v205
    %v277 = vunpack.c.l.b16 %v206
    %v278 = vunpack.c.l.b16 %v207
    %v279 = vunpack.c.l.b16 %v208
    %v280 = vunpack.c.l.b16 %v209
    %v281 = vunpack.c.l.b16 %v210
    %v282 = vunpack.c.l.b16 %v211
    %v283 = vunpack.c.l.b16 %v212
    %v284 = vunpack.c.l.b16 %v213
    %v285 = vunpack.c.l.b16 %v214
    %v286 = vunpack.c.l.b16 %v215
    %v287 = vunpack.c.l.b16 %v216
    %v288 = vunpack.c.l.b16 %v217
    %v289 = vunpack.c.l.b16 %v218
    %v290 = vunpack.c.l.b16 %v219
    %v291 = vunpack.c.l.b16 %v220
    %v292 = vunpack.c.l.b16 %v221
    %v293 = vunpack.c.l.b16 %v222
    %v294 = vunpack.c.l.b16 %v223
    %v295 = vunpack.c.l.b16 %v224
    %v296 = vunpack.c.l.b16 %v225
    %v297 = vpack.c.b16 %v266, %v265
    %v298 = vpack.c.b16 %v268, %v267
    %v299 = vpack.c.b16 %v270, %v269
    %v300 = vpack.c.b16 %v272, %v271
    %v301 = vpack.c.b16 %v274, %v273
    %v302 = vpack.c.b16 %v276, %v275
    %v303 = vpack.c.b16 %v278, %v277
    %v304 = vpack.c.b16 %v280, %v279
    %v305 = vpack.c.b16 %v282, %v281
    %v306 = vpack.c.b16 %v284, %v283
    %v307 = vpack.c.b16 %v286, %v285
    %v308 = vpack.c.b16 %v288, %v287
    %v309 = vpack.c.b16 %v290, %v289
    %v310 = vpack.c.b16 %v292, %v291
    %v311 = vpack.c.b16 %v294, %v293
    %v312 = vpack.c.b16 %v296, %v295
    %329 = vmatprep.subr.bf16.mxu0 0
    %330 = vmatpush1.bf16.msra.mxu0 %v297
    %331 = vmatprep.subr.bf16.mxu0 0
    %332 = vmatpush1.bf16.msra.mxu0 %v298
    %333 = vmatprep.subr.bf16.mxu0 0
    %334 = vmatpush1.bf16.msra.mxu0 %v299
    %335 = vmatprep.subr.bf16.mxu0 0
    %336 = vmatpush1.bf16.msra.mxu0 %v300
    %337 = vmatprep.subr.bf16.mxu0 0
    %338 = vmatpush1.bf16.msra.mxu0 %v301
    %339 = vmatprep.subr.bf16.mxu0 0
    %340 = vmatpush1.bf16.msra.mxu0 %v302
    %341 = vmatprep.subr.bf16.mxu0 0
    %342 = vmatpush1.bf16.msra.mxu0 %v303
    %343 = vmatprep.subr.bf16.mxu0 0
    %344 = vmatpush1.bf16.msra.mxu0 %v304
    %345 = vmatprep.subr.bf16.mxu0 0
    %346 = vmatpush1.bf16.msra.mxu0 %v305
    %347 = vmatprep.subr.bf16.mxu0 0
    %348 = vmatpush1.bf16.msra.mxu0 %v306
    %349 = vmatprep.subr.bf16.mxu0 0
    %350 = vmatpush1.bf16.msra.mxu0 %v307
    %351 = vmatprep.subr.bf16.mxu0 0
    %352 = vmatpush1.bf16.msra.mxu0 %v308
    %353 = vmatprep.subr.bf16.mxu0 0
    %354 = vmatpush1.bf16.msra.mxu0 %v309
    %355 = vmatprep.subr.bf16.mxu0 0
    %356 = vmatpush1.bf16.msra.mxu0 %v310
    %357 = vmatprep.subr.bf16.mxu0 0
    %358 = vmatpush1.bf16.msra.mxu0 %v311
    %359 = vmatprep.subr.bf16.mxu0 0
    %360 = vmatpush1.bf16.msra.mxu0 %v312
    %361 = vmatprep.mubr.bf16.mxu0 %v193
    %362 = vmatmul.mubr.bf16.gmra.mrb[0].mxu0 %v192
    %v363 = vpop.f32.mrb[0].mxu0
    %v364 = vadd.f32 %v231, %v363
    %v365 = vpop.f32.mrb[0].mxu0
    %v366 = vpop.f32.mrb[0].mxu0
    %v367 = vpop.f32.mrb[0].mxu0
    %368 = vdwg.mxu0
    %v369 = vmax.f32 %v364, 0.0
    %v370 = vpack.c.bf16 %v369, %v369
    %v371 = vld [vmem:[%s5] sm:$0xf]
    %v372 = vld [vmem:[%s5 + $0x4] sm:$0xf]
    %v373 = vld [vmem:[%s5 + $0x8] sm:$0xf]
    %v374 = vld [vmem:[%s5 + $0xc] sm:$0xf]
    %v375 = vld [vmem:[%s5 + $0x10] sm:$0xf]
    %v376 = vld [vmem:[%s5 + $0x14] sm:$0xf]
    %v377 = vld [vmem:[%s5 + $0x18] sm:$0xf]
    %v378 = vld [vmem:[%s5 + $0x1c] sm:$0xf]
    %v379 = vld [vmem:[%s5 + $0x20] sm:$0xf]
    %v380 = vld [vmem:[%s5 + $0x24] sm:$0xf]
    %v381 = vld [vmem:[%s5 + $0x28] sm:$0xf]
    %v382 = vld [vmem:[%s5 + $0x2c] sm:$0xf]
    %v383 = vld [vmem:[%s5 + $0x30] sm:$0xf]
    %v384 = vld [vmem:[%s5 + $0x34] sm:$0xf]
    %v385 = vld [vmem:[%s5 + $0x38] sm:$0xf]
    %v386 = vld [vmem:[%s5 + $0x3c] sm:$0xf]
    %v387 = vld [vmem:[%s6] sm:$0x1]
    %v389 = vlaneseq
    %v390 = vshrl.u32 %v389, 7
    %v391 = vsub.s32 0, %v390
    %v392 = vrot.slane %v387, %v391
    %v410 = vunpack.c.l.b16 %v371
    %v411 = vunpack.c.l.b16 %v372
    %v412 = vunpack.c.l.b16 %v373
    %v413 = vunpack.c.l.b16 %v374
    %v414 = vunpack.c.l.b16 %v375
    %v415 = vunpack.c.l.b16 %v376
    %v416 = vunpack.c.l.b16 %v377
    %v417 = vunpack.c.l.b16 %v378
    %v418 = vunpack.c.l.b16 %v379
    %v419 = vunpack.c.l.b16 %v380
    %v420 = vunpack.c.l.b16 %v381
    %v421 = vunpack.c.l.b16 %v382
    %v422 = vunpack.c.l.b16 %v383
    %v423 = vunpack.c.l.b16 %v384
    %v424 = vunpack.c.l.b16 %v385
    %v425 = vunpack.c.l.b16 %v386
    %v426 = vpack.c.b16 %v411, %v410
    %v427 = vpack.c.b16 %v413, %v412
    %v428 = vpack.c.b16 %v415, %v414
    %v429 = vpack.c.b16 %v417, %v416
    %v430 = vpack.c.b16 %v419, %v418
    %v431 = vpack.c.b16 %v421, %v420
    %v432 = vpack.c.b16 %v423, %v422
    %v433 = vpack.c.b16 %v425, %v424
    %442 = vmatprep.subr.bf16.mxu0 0
    %443 = vmatpush1.bf16.msra.mxu0 %v426
    %444 = vmatprep.subr.bf16.mxu0 0
    %445 = vmatpush1.bf16.msra.mxu0 %v427
    %446 = vmatprep.subr.bf16.mxu0 0
    %447 = vmatpush1.bf16.msra.mxu0 %v428
    %448 = vmatprep.subr.bf16.mxu0 0
    %449 = vmatpush1.bf16.msra.mxu0 %v429
    %450 = vmatprep.subr.bf16.mxu0 0
    %451 = vmatpush1.bf16.msra.mxu0 %v430
    %452 = vmatprep.subr.bf16.mxu0 0
    %453 = vmatpush1.bf16.msra.mxu0 %v431
    %454 = vmatprep.subr.bf16.mxu0 0
    %455 = vmatpush1.bf16.msra.mxu0 %v432
    %456 = vmatprep.subr.bf16.mxu0 0
    %457 = vmatpush1.bf16.msra.mxu0 %v433
    %458 = vmatprep.subr.bf16.mxu0 0
    %459 = vmatpush1.bf16.msra.mxu0 0
    %460 = vmatprep.subr.bf16.mxu0 0
    %461 = vmatpush1.bf16.msra.mxu0 0
    %462 = vmatprep.subr.bf16.mxu0 0
    %463 = vmatpush1.bf16.msra.mxu0 0
    %464 = vmatprep.subr.bf16.mxu0 0
    %465 = vmatpush1.bf16.msra.mxu0 0
    %466 = vmatprep.subr.bf16.mxu0 0
    %467 = vmatpush1.bf16.msra.mxu0 0
    %468 = vmatprep.subr.bf16.mxu0 0
    %469 = vmatpush1.bf16.msra.mxu0 0
    %470 = vmatprep.subr.bf16.mxu0 0
    %471 = vmatpush1.bf16.msra.mxu0 0
    %472 = vmatprep.subr.bf16.mxu0 0
    %473 = vmatpush1.bf16.msra.mxu0 0
    %474 = vmatprep.mubr.bf16.mxu0 0
    %475 = vmatmul.mubr.bf16.gmra.mrb[0].mxu0 %v370
    %v476 = vpop.f32.mrb[0].mxu0
    %v477 = vadd.f32 %v392, %v476
    %v478 = vpop.f32.mrb[0].mxu0
    %v479 = vpop.f32.mrb[0].mxu0
    %v480 = vpop.f32.mrb[0].mxu0
    %481 = vdwg.mxu0
    %v482 = vmax.f32 %v477, 0.0
    %v483 = vpack.c.bf16 %v482, %v482
    %v484 = vld [vmem:[%s7] sm:$0xf]
    %v485 = vld [vmem:[%s7 + $0x4] sm:$0xf]
    %v486 = vld [vmem:[%s7 + $0x8] sm:$0xf]
    %v487 = vld [vmem:[%s7 + $0xc] sm:$0xf]
    %v488 = vld [vmem:[%s8] sm:$0x1]
    %v490 = vlaneseq
    %v491 = vshrl.u32 %v490, 7
    %v492 = vsub.s32 0, %v491
    %v493 = vrot.slane %v488, %v492
    %v499 = vunpack.c.l.b16 %v484
    %v500 = vunpack.c.l.b16 %v485
    %v501 = vunpack.c.l.b16 %v486
    %v502 = vunpack.c.l.b16 %v487
    %v503 = vpack.c.b16 %v500, %v499
    %v504 = vpack.c.b16 %v502, %v501
    %vm507 = vcmask 261120
    %v509 = vsel %vm507, %v483, 0
    %511 = vmatprep.subr.bf16.mxu0 0
    %512 = vmatpush1.bf16.msra.mxu0 %v503
    %513 = vmatprep.subr.bf16.mxu0 0
    %514 = vmatpush1.bf16.msra.mxu0 %v504
    %515 = vmatprep.subr.bf16.mxu0 0
    %516 = vmatpush1.bf16.msra.mxu0 0
    %517 = vmatprep.subr.bf16.mxu0 0
    %518 = vmatpush1.bf16.msra.mxu0 0
    %519 = vmatprep.subr.bf16.mxu0 0
    %520 = vmatpush1.bf16.msra.mxu0 0
    %521 = vmatprep.subr.bf16.mxu0 0
    %522 = vmatpush1.bf16.msra.mxu0 0
    %523 = vmatprep.subr.bf16.mxu0 0
    %524 = vmatpush1.bf16.msra.mxu0 0
    %525 = vmatprep.subr.bf16.mxu0 0
    %526 = vmatpush1.bf16.msra.mxu0 0
    %527 = vmatprep.subr.bf16.mxu0 0
    %528 = vmatpush1.bf16.msra.mxu0 0
    %529 = vmatprep.subr.bf16.mxu0 0
    %530 = vmatpush1.bf16.msra.mxu0 0
    %531 = vmatprep.subr.bf16.mxu0 0
    %532 = vmatpush1.bf16.msra.mxu0 0
    %533 = vmatprep.subr.bf16.mxu0 0
    %534 = vmatpush1.bf16.msra.mxu0 0
    %535 = vmatprep.subr.bf16.mxu0 0
    %536 = vmatpush1.bf16.msra.mxu0 0
    %537 = vmatprep.subr.bf16.mxu0 0
    %538 = vmatpush1.bf16.msra.mxu0 0
    %539 = vmatprep.subr.bf16.mxu0 0
    %540 = vmatpush1.bf16.msra.mxu0 0
    %541 = vmatprep.subr.bf16.mxu0 0
    %542 = vmatpush1.bf16.msra.mxu0 0
    %543 = vmatprep.mubr.bf16.mxu0 0
    %544 = vmatmul.mubr.bf16.gmra.mrb[0].mxu0 %v509
    %v545 = vpop.f32.mrb[0].mxu0
    %v546 = vadd.f32 %v493, %v545
    %v547 = vpop.f32.mrb[0].mxu0
    %v548 = vpop.f32.mrb[0].mxu0
    %v549 = vpop.f32.mrb[0].mxu0
    %550 = vdwg.mxu0
    %v551 = vmax.f32 %v546, 0.0
    %v552 = vpack.c.bf16 %v551, %v551
    %v553 = vld [vmem:[%s9] sm:$0xff]
    %v554 = vld [vmem:[%s9 + $0x8] sm:$0xff]
    %v555 = vld [vmem:[%s9 + $0x10] sm:$0xff]
    %v556 = vld [vmem:[%s9 + $0x18] sm:$0xff]
    %v557 = vld [vmem:[%s9 + $0x20] sm:$0xff]
    %v558 = vld [vmem:[%s9 + $0x28] sm:$0xff]
    %v559 = vld [vmem:[%s9 + $0x30] sm:$0xff]
    %v560 = vld [vmem:[%s9 + $0x38] sm:$0xff]
    %v561 = vld [vmem:[%s9 + $0x40] sm:$0xff]
    %v562 = vld [vmem:[%s9 + $0x48] sm:$0xff]
    %v563 = vld [vmem:[%s9 + $0x50] sm:$0xff]
    %v564 = vld [vmem:[%s9 + $0x58] sm:$0xff]
    %v565 = vld [vmem:[%s9 + $0x60] sm:$0xff]
    %v566 = vld [vmem:[%s9 + $0x68] sm:$0xff]
    %v567 = vld [vmem:[%s9 + $0x70] sm:$0xff]
    %v568 = vld [vmem:[%s9 + $0x78] sm:$0xff]
    %v569 = vld [vmem:[%s10] sm:$0x3]
    %v571 = vlaneseq
    %v572 = vshrl.u32 %v571, 7
    %v573 = vsub.s32 0, %v572
    %v574 = vrot.slane %v569, %v573
    %v575 = vlaneseq
    %v576 = vshrl.u32 %v575, 7
    %v577 = vsub.s32 1, %v576
    %v578 = vrot.slane %v569, %v577
    %v597 = vunpack.c.l.b16 %v553
    %v598 = vunpack.c.h.b16 %v553
    %v599 = vunpack.c.l.b16 %v554
    %v600 = vunpack.c.h.b16 %v554
    %v601 = vunpack.c.l.b16 %v555
    %v602 = vunpack.c.h.b16 %v555
    %v603 = vunpack.c.l.b16 %v556
    %v604 = vunpack.c.h.b16 %v556
    %v605 = vunpack.c.l.b16 %v557
    %v606 = vunpack.c.h.b16 %v557
    %v607 = vunpack.c.l.b16 %v558
    %v608 = vunpack.c.h.b16 %v558
    %v609 = vunpack.c.l.b16 %v559
    %v610 = vunpack.c.h.b16 %v559
    %v611 = vunpack.c.l.b16 %v560
    %v612 = vunpack.c.h.b16 %v560
    %v613 = vunpack.c.l.b16 %v561
    %v614 = vunpack.c.h.b16 %v561
    %v615 = vunpack.c.l.b16 %v562
    %v616 = vunpack.c.h.b16 %v562
    %v617 = vunpack.c.l.b16 %v563
    %v618 = vunpack.c.h.b16 %v563
    %v619 = vunpack.c.l.b16 %v564
    %v620 = vunpack.c.h.b16 %v564
    %v621 = vunpack.c.l.b16 %v565
    %v622 = vunpack.c.h.b16 %v565
    %v623 = vunpack.c.l.b16 %v566
    %v624 = vunpack.c.h.b16 %v566
    %v625 = vunpack.c.l.b16 %v567
    %v626 = vunpack.c.h.b16 %v567
    %v627 = vunpack.c.l.b16 %v568
    %v628 = vunpack.c.h.b16 %v568
    %v629 = vpack.c.b16 %v599, %v597
    %v630 = vpack.c.b16 %v600, %v598
    %v631 = vpack.c.b16 %v603, %v601
    %v632 = vpack.c.b16 %v604, %v602
    %v633 = vpack.c.b16 %v607, %v605
    %v634 = vpack.c.b16 %v608, %v606
    %v635 = vpack.c.b16 %v611, %v609
    %v636 = vpack.c.b16 %v612, %v610
    %v637 = vpack.c.b16 %v615, %v613
    %v638 = vpack.c.b16 %v616, %v614
    %v639 = vpack.c.b16 %v619, %v617
    %v640 = vpack.c.b16 %v620, %v618
    %v641 = vpack.c.b16 %v623, %v621
    %v642 = vpack.c.b16 %v624, %v622
    %v643 = vpack.c.b16 %v627, %v625
    %v644 = vpack.c.b16 %v628, %v626
    %661 = vmatprep.subr.bf16.mxu0 %v630
    %662 = vmatpush1.bf16.msra.mxu0 %v629
    %663 = vmatprep.subr.bf16.mxu0 %v632
    %664 = vmatpush1.bf16.msra.mxu0 %v631
    %665 = vmatprep.subr.bf16.mxu0 %v634
    %666 = vmatpush1.bf16.msra.mxu0 %v633
    %667 = vmatprep.subr.bf16.mxu0 %v636
    %668 = vmatpush1.bf16.msra.mxu0 %v635
    %669 = vmatprep.subr.bf16.mxu0 %v638
    %670 = vmatpush1.bf16.msra.mxu0 %v637
    %671 = vmatprep.subr.bf16.mxu0 %v640
    %672 = vmatpush1.bf16.msra.mxu0 %v639
    %673 = vmatprep.subr.bf16.mxu0 %v642
    %674 = vmatpush1.bf16.msra.mxu0 %v641
    %675 = vmatprep.subr.bf16.mxu0 %v644
    %676 = vmatpush1.bf16.msra.mxu0 %v643
    %677 = vmatprep.subr.bf16.mxu0 0
    %678 = vmatpush1.bf16.msra.mxu0 0
    %679 = vmatprep.subr.bf16.mxu0 0
    %680 = vmatpush1.bf16.msra.mxu0 0
    %681 = vmatprep.subr.bf16.mxu0 0
    %682 = vmatpush1.bf16.msra.mxu0 0
    %683 = vmatprep.subr.bf16.mxu0 0
    %684 = vmatpush1.bf16.msra.mxu0 0
    %685 = vmatprep.subr.bf16.mxu0 0
    %686 = vmatpush1.bf16.msra.mxu0 0
    %687 = vmatprep.subr.bf16.mxu0 0
    %688 = vmatpush1.bf16.msra.mxu0 0
    %689 = vmatprep.subr.bf16.mxu0 0
    %690 = vmatpush1.bf16.msra.mxu0 0
    %691 = vmatprep.subr.bf16.mxu0 0
    %692 = vmatpush1.bf16.msra.mxu0 0
    %693 = vmatprep.mubr.bf16.mxu0 0
    %694 = vmatmul.mubr.bf16.gmra.mrb[0].mxu0 %v552
    %v695 = vpop.f32.mrb[0].mxu0
    %v696 = vadd.f32 %v574, %v695
    %v697 = vpop.f32.mrb[0].mxu0
    %v698 = vadd.f32 %v578, %v697
    %v699 = vpop.f32.mrb[0].mxu0
    %v700 = vpop.f32.mrb[0].mxu0
    %701 = vdwg.mxu0
    %v702 = vmax.f32 %v696, 0.0
    %v703 = vmax.f32 %v698, 0.0
    %v704 = vpack.c.bf16 %v702, %v702
    %v705 = vpack.c.bf16 %v703, %v703
    %v706 = vld [vmem:[%s11] sm:$0xf]
    %v707 = vld [vmem:[%s11 + $0x4] sm:$0xf]
    %v708 = vld [vmem:[%s11 + $0x8] sm:$0xf]
    %v709 = vld [vmem:[%s11 + $0xc] sm:$0xf]
    %v710 = vld [vmem:[%s11 + $0x10] sm:$0xf]
    %v711 = vld [vmem:[%s11 + $0x14] sm:$0xf]
    %v712 = vld [vmem:[%s11 + $0x18] sm:$0xf]
    %v713 = vld [vmem:[%s11 + $0x1c] sm:$0xf]
    %v714 = vld [vmem:[%s11 + $0x20] sm:$0xf]
    %v715 = vld [vmem:[%s11 + $0x24] sm:$0xf]
    %v716 = vld [vmem:[%s11 + $0x28] sm:$0xf]
    %v717 = vld [vmem:[%s11 + $0x2c] sm:$0xf]
    %v718 = vld [vmem:[%s11 + $0x30] sm:$0xf]
    %v719 = vld [vmem:[%s11 + $0x34] sm:$0xf]
    %v720 = vld [vmem:[%s11 + $0x38] sm:$0xf]
    %v721 = vld [vmem:[%s11 + $0x3c] sm:$0xf]
    %v722 = vld [vmem:[%s11 + $0x40] sm:$0xf]
    %v723 = vld [vmem:[%s11 + $0x44] sm:$0xf]
    %v724 = vld [vmem:[%s11 + $0x48] sm:$0xf]
    %v725 = vld [vmem:[%s11 + $0x4c] sm:$0xf]
    %v726 = vld [vmem:[%s11 + $0x50] sm:$0xf]
    %v727 = vld [vmem:[%s11 + $0x54] sm:$0xf]
    %v728 = vld [vmem:[%s11 + $0x58] sm:$0xf]
    %v729 = vld [vmem:[%s11 + $0x5c] sm:$0xf]
    %v730 = vld [vmem:[%s11 + $0x60] sm:$0xf]
    %v731 = vld [vmem:[%s11 + $0x64] sm:$0xf]
    %v732 = vld [vmem:[%s11 + $0x68] sm:$0xf]
    %v733 = vld [vmem:[%s11 + $0x6c] sm:$0xf]
    %v734 = vld [vmem:[%s11 + $0x70] sm:$0xf]
    %v735 = vld [vmem:[%s11 + $0x74] sm:$0xf]
    %v736 = vld [vmem:[%s11 + $0x78] sm:$0xf]
    %v737 = vld [vmem:[%s11 + $0x7c] sm:$0xf]
    %v738 = vld [vmem:[%s12] sm:$0x1]
    %v740 = vlaneseq
    %v741 = vshrl.u32 %v740, 7
    %v742 = vsub.s32 0, %v741
    %v743 = vrot.slane %v738, %v742
    %v777 = vunpack.c.l.b16 %v706
    %v778 = vunpack.c.l.b16 %v707
    %v779 = vunpack.c.l.b16 %v708
    %v780 = vunpack.c.l.b16 %v709
    %v781 = vunpack.c.l.b16 %v710
    %v782 = vunpack.c.l.b16 %v711
    %v783 = vunpack.c.l.b16 %v712
    %v784 = vunpack.c.l.b16 %v713
    %v785 = vunpack.c.l.b16 %v714
    %v786 = vunpack.c.l.b16 %v715
    %v787 = vunpack.c.l.b16 %v716
    %v788 = vunpack.c.l.b16 %v717
    %v789 = vunpack.c.l.b16 %v718
    %v790 = vunpack.c.l.b16 %v719
    %v791 = vunpack.c.l.b16 %v720
    %v792 = vunpack.c.l.b16 %v721
    %v793 = vunpack.c.l.b16 %v722
    %v794 = vunpack.c.l.b16 %v723
    %v795 = vunpack.c.l.b16 %v724
    %v796 = vunpack.c.l.b16 %v725
    %v797 = vunpack.c.l.b16 %v726
    %v798 = vunpack.c.l.b16 %v727
    %v799 = vunpack.c.l.b16 %v728
    %v800 = vunpack.c.l.b16 %v729
    %v801 = vunpack.c.l.b16 %v730
    %v802 = vunpack.c.l.b16 %v731
    %v803 = vunpack.c.l.b16 %v732
    %v804 = vunpack.c.l.b16 %v733
    %v805 = vunpack.c.l.b16 %v734
    %v806 = vunpack.c.l.b16 %v735
    %v807 = vunpack.c.l.b16 %v736
    %v808 = vunpack.c.l.b16 %v737
    %v809 = vpack.c.b16 %v778, %v777
    %v810 = vpack.c.b16 %v780, %v779
    %v811 = vpack.c.b16 %v782, %v781
    %v812 = vpack.c.b16 %v784, %v783
    %v813 = vpack.c.b16 %v786, %v785
    %v814 = vpack.c.b16 %v788, %v787
    %v815 = vpack.c.b16 %v790, %v789
    %v816 = vpack.c.b16 %v792, %v791
    %v817 = vpack.c.b16 %v794, %v793
    %v818 = vpack.c.b16 %v796, %v795
    %v819 = vpack.c.b16 %v798, %v797
    %v820 = vpack.c.b16 %v800, %v799
    %v821 = vpack.c.b16 %v802, %v801
    %v822 = vpack.c.b16 %v804, %v803
    %v823 = vpack.c.b16 %v806, %v805
    %v824 = vpack.c.b16 %v808, %v807
    %841 = vmatprep.subr.bf16.mxu0 0
    %842 = vmatpush1.bf16.msra.mxu0 %v809
    %843 = vmatprep.subr.bf16.mxu0 0
    %844 = vmatpush1.bf16.msra.mxu0 %v810
    %845 = vmatprep.subr.bf16.mxu0 0
    %846 = vmatpush1.bf16.msra.mxu0 %v811
    %847 = vmatprep.subr.bf16.mxu0 0
    %848 = vmatpush1.bf16.msra.mxu0 %v812
    %849 = vmatprep.subr.bf16.mxu0 0
    %850 = vmatpush1.bf16.msra.mxu0 %v813
    %851 = vmatprep.subr.bf16.mxu0 0
    %852 = vmatpush1.bf16.msra.mxu0 %v814
    %853 = vmatprep.subr.bf16.mxu0 0
    %854 = vmatpush1.bf16.msra.mxu0 %v815
    %855 = vmatprep.subr.bf16.mxu0 0
    %856 = vmatpush1.bf16.msra.mxu0 %v816
    %857 = vmatprep.subr.bf16.mxu0 0
    %858 = vmatpush1.bf16.msra.mxu0 %v817
    %859 = vmatprep.subr.bf16.mxu0 0
    %860 = vmatpush1.bf16.msra.mxu0 %v818
    %861 = vmatprep.subr.bf16.mxu0 0
    %862 = vmatpush1.bf16.msra.mxu0 %v819
    %863 = vmatprep.subr.bf16.mxu0 0
    %864 = vmatpush1.bf16.msra.mxu0 %v820
    %865 = vmatprep.subr.bf16.mxu0 0
    %866 = vmatpush1.bf16.msra.mxu0 %v821
    %867 = vmatprep.subr.bf16.mxu0 0
    %868 = vmatpush1.bf16.msra.mxu0 %v822
    %869 = vmatprep.subr.bf16.mxu0 0
    %870 = vmatpush1.bf16.msra.mxu0 %v823
    %871 = vmatprep.subr.bf16.mxu0 0
    %872 = vmatpush1.bf16.msra.mxu0 %v824
    %873 = vmatprep.mubr.bf16.mxu0 %v705
    %874 = vmatmul.mubr.bf16.gmra.mrb[0].mxu0 %v704
    %v875 = vpop.f32.mrb[0].mxu0
    %v876 = vadd.f32 %v743, %v875
    %v877 = vpop.f32.mrb[0].mxu0
    %v878 = vpop.f32.mrb[0].mxu0
    %v879 = vpop.f32.mrb[0].mxu0
    %880 = vdwg.mxu0
    %881 = vst.msk [vmem:[#allocation8] sm:$0xff] %vm145, %v876
    // Predicated region
    $region66: #{tpu_custom_call.1} parent=1 // pred_check
      _
    $region67: #{tpu_custom_call.1} parent=1 // pred_check_branch
      %883 = sbr.rel (0) target = $region69
    $region68: #{tpu_custom_call.1} parent=1 // pred_region
      %s885 = ssub.s32 128, 128
      %886 = vsyncadd [#allocation4], %s885
      %s888 = sshll.u32 [#allocation8], 4
      %s889 = int_to_ptr.vmem [resolvable:$true] %s888
      %891 = dma.vmem_to_hbm [thread:$0]  %s889, 128, %s13, [#allocation4]
    $region69: #{tpu_custom_call.1} parent=1 // pred_fallthru
      _
    // Predicated region
    $region70: #{tpu_custom_call.1} parent=1 // pred_check
      _
    $region71: #{tpu_custom_call.1} parent=1 // pred_check_branch
      %893 = sbr.rel (0) target = $region73
    $region72: #{tpu_custom_call.1} parent=1 // pred_region
      %894 = dma.done [#allocation4], 128
    $region73: #{tpu_custom_call.1} parent=1 // pred_fallthru
      _
    %895 = vsyncpa [#allocation3], 1
    %896 = vsyncpa [#allocation6], 1
    %897 = vsyncpa [#allocation4], 1

// kernel: tpu_custom_call.1
$region0: #{tpu_custom_call.1}
  #allocation0 [shape = 'u32[]', space=smem, size = 0x4, offset = 0x4, fixed_abs, tag = 'smem constant byte address 0x4 - core index']
  #allocation1 [shape = 'u32[144,128]{1,0:T(1,128)}', space=vmem, size = 0x12000, scoped, tag = 'internal scratch']
  %s0 = inlined_call_operand.hbm [shape: f32[8,64], index: 0, kind: input, shape index: {}]
  %s1 = inlined_call_operand.hbm [shape: bf16[64,256], index: 1, kind: input, shape index: {}]
  %s2 = inlined_call_operand.vmem [shape: f32[1,256], index: 2, kind: input, shape index: {}]
  %s3 = inlined_call_operand.vmem [shape: bf16[256,128], index: 3, kind: input, shape index: {}]
  %s4 = inlined_call_operand.hbm [shape: f32[1,128], index: 4, kind: input, shape index: {}]
  %s5 = inlined_call_operand.vmem [shape: bf16[128,32], index: 5, kind: input, shape index: {}]
  %s6 = inlined_call_operand.vmem [shape: f32[1,32], index: 6, kind: input, shape index: {}]
  %s7 = inlined_call_operand.vmem [shape: bf16[32,128], index: 7, kind: input, shape index: {}]
  %s8 = inlined_call_operand.vmem [shape: f32[1,128], index: 8, kind: input, shape index: {}]
  %s9 = inlined_call_operand.vmem [shape: bf16[128,256], index: 9, kind: input, shape index: {}]
  %s10 = inlined_call_operand.vmem [shape: f32[1,256], index: 10, kind: input, shape index: {}]
  %s11 = inlined_call_operand.vmem [shape: bf16[256,64], index: 11, kind: input, shape index: {}]
  %s12 = inlined_call_operand.vmem [shape: f32[1,64], index: 12, kind: input, shape index: {}]
  %s13 = inlined_call_operand.hbm [shape: f32[8,64], index: 13, kind: output, shape index: {}]
  %s14 = sld [smem:[#allocation0]]
  $region74: #{tpu_custom_call.1} parent=0
    _
  %s16 = ssub.s32 1, %s14
  %s17 = scalar_select 0, %s16, %s14
  $region1: #{tpu_custom_call.1} parent=0
    #allocation2 [shape = 'u8[4096]{0}', space=vmem, size = 0x1000, scoped, tag = 'input window, operand 0, single buffered']
    #allocation3 [shape = 's32[1]{0}', space=sflag, size = 0x4, scoped, tag = 'scoped memory for tpu_custom_call.1']
    #allocation4 [shape = 's32[1]{0}', space=sflag, size = 0x4, scoped, tag = 'scoped memory for tpu_custom_call.1']
    #allocation5 [shape = 'u8[32768]{0}', space=vmem, size = 0x8000, scoped, tag = 'input window, operand 1, single buffered']
    #allocation6 [shape = 's32[1]{0}', space=sflag, size = 0x4, scoped, tag = 'scoped memory for tpu_custom_call.1']
    #allocation7 [shape = 'u8[512]{0}', space=vmem, size = 0x400, scoped, tag = 'input window, operand 4, single buffered']
    #allocation8 [shape = 'u8[4096]{0}', space=vmem, size = 0x1000, scoped, tag = 'output window, operand 0, single buffered']
    %18 = vsyncpa [#allocation3], 0
    %19 = vsyncpa [#allocation6], 0
    %20 = vsyncpa [#allocation4], 0
    // Predicated region
    $region2: #{tpu_custom_call.1} parent=1 // pred_check
      _
    $region3: #{tpu_custom_call.1} parent=1 // pred_check_branch
      %22 = sbr.rel (0) target = $region5
    $region4: #{tpu_custom_call.1} parent=1 // pred_region
      %s24 = ssub.s32 128, 128
      %25 = vsyncadd [#allocation3], %s24
      %s27 = sshll.u32 [#allocation2], 4
      %s28 = int_to_ptr.vmem [resolvable:$true] %s27
      %30 = dma.hbm_to_vmem [thread:$0]  %s0, 128, %s28, [#allocation3]
    $region5: #{tpu_custom_call.1} parent=1 // pred_fallthru
      _
    // Predicated region
    $region6: #{tpu_custom_call.1} parent=1 // pred_check
      _
    $region7: #{tpu_custom_call.1} parent=1 // pred_check_branch
      %32 = sbr.rel (0) target = $region9
    $region8: #{tpu_custom_call.1} parent=1 // pred_region
      %s34 = ssub.s32 1024, 1024
      %35 = vsyncadd [#allocation6], %s34
      %s36 = sshll.u32 [#allocation5], 4
      %s37 = int_to_ptr.vmem [resolvable:$true] %s36
      %42 = dma.hbm_to_vmem [thread:$0]  %s1, 1024, %s37, [#allocation6], 128, 128, 8
    $region9: #{tpu_custom_call.1} parent=1 // pred_fallthru
      _
    // Predicated region
    $region10: #{tpu_custom_call.1} parent=1 // pred_check
      _
    $region11: #{tpu_custom_call.1} parent=1 // pred_check_branch
      %44 = sbr.rel (0) target = $region13
    $region12: #{tpu_custom_call.1} parent=1 // pred_region
      _
    $region13: #{tpu_custom_call.1} parent=1 // pred_fallthru
      _
    // Predicated region
    $region14: #{tpu_custom_call.1} parent=1 // pred_check
      _
    $region15: #{tpu_custom_call.1} parent=1 // pred_check_branch
      %46 = sbr.rel (0) target = $region17
    $region16: #{tpu_custom_call.1} parent=1 // pred_region
      _
    $region17: #{tpu_custom_call.1} parent=1 // pred_fallthru
      _
    // Predicated region
    $region18: #{tpu_custom_call.1} parent=1 // pred_check
      _
    $region19: #{tpu_custom_call.1} parent=1 // pred_check_branch
      %48 = sbr.rel (0) target = $region21
    $region20: #{tpu_custom_call.1} parent=1 // pred_region
      %s50 = ssub.s32 16, 16
      %51 = vsyncadd [#allocation6], %s50
      %s53 = sshll.u32 [#allocation7], 4
      %s54 = int_to_ptr.vmem [resolvable:$true] %s53
      %56 = dma.hbm_to_vmem [thread:$0]  %s4, 16, %s54, [#allocation6]
    $region21: #{tpu_custom_call.1} parent=1 // pred_fallthru
      _
    // Predicated region
    $region22: #{tpu_custom_call.1} parent=1 // pred_check
      _
    $region23: #{tpu_custom_call.1} parent=1 // pred_check_branch
      %58 = sbr.rel (0) target = $region25
    $region24: #{tpu_custom_call.1} parent=1 // pred_region
      _
    $region25: #{tpu_custom_call.1} parent=1 // pred_fallthru
      _
    // Predicated region
    $region26: #{tpu_custom_call.1} parent=1 // pred_check
      _
    $region27: #{tpu_custom_call.1} parent=1 // pred_check_branch
      %60 = sbr.rel (0) target = $region29
    $region28: #{tpu_custom_call.1} parent=1 // pred_region
      _
    $region29: #{tpu_custom_call.1} parent=1 // pred_fallthru
      _
    // Predicated region
    $region30: #{tpu_custom_call.1} parent=1 // pred_check
      _
    $region31: #{tpu_custom_call.1} parent=1 // pred_check_branch
      %62 = sbr.rel (0) target = $region33
    $region32: #{tpu_custom_call.1} parent=1 // pred_region
      _
    $region33: #{tpu_custom_call.1} parent=1 // pred_fallthru
      _
    // Predicated region
    $region34: #{tpu_custom_call.1} parent=1 // pred_check
      _
    $region35: #{tpu_custom_call.1} parent=1 // pred_check_branch
      %64 = sbr.rel (0) target = $region37
    $region36: #{tpu_custom_call.1} parent=1 // pred_region
      _
    $region37: #{tpu_custom_call.1} parent=1 // pred_fallthru
      _
    // Predicated region
    $region38: #{tpu_custom_call.1} parent=1 // pred_check
      _
    $region39: #{tpu_custom_call.1} parent=1 // pred_check_branch
      %66 = sbr.rel (0) target = $region41
    $region40: #{tpu_custom_call.1} parent=1 // pred_region
      _
    $region41: #{tpu_custom_call.1} parent=1 // pred_fallthru
      _
    // Predicated region
    $region42: #{tpu_custom_call.1} parent=1 // pred_check
      _
    $region43: #{tpu_custom_call.1} parent=1 // pred_check_branch
      %68 = sbr.rel (0) target = $region45
    $region44: #{tpu_custom_call.1} parent=1 // pred_region
      _
    $region45: #{tpu_custom_call.1} parent=1 // pred_fallthru
      _
    // Predicated region
    $region46: #{tpu_custom_call.1} parent=1 // pred_check
      _
    $region47: #{tpu_custom_call.1} parent=1 // pred_check_branch
      %70 = sbr.rel (0) target = $region49
    $region48: #{tpu_custom_call.1} parent=1 // pred_region
      _
    $region49: #{tpu_custom_call.1} parent=1 // pred_fallthru
      _
    // Predicated region
    $region50: #{tpu_custom_call.1} parent=1 // pred_check
      _
    $region51: #{tpu_custom_call.1} parent=1 // pred_check_branch
      %72 = sbr.rel (0) target = $region53
    $region52: #{tpu_custom_call.1} parent=1 // pred_region
      _
    $region53: #{tpu_custom_call.1} parent=1 // pred_fallthru
      _
    // Predicated region
    $region54: #{tpu_custom_call.1} parent=1 // pred_check
      _
    $region55: #{tpu_custom_call.1} parent=1 // pred_check_branch
      %74 = sbr.rel (0) target = $region57
    $region56: #{tpu_custom_call.1} parent=1 // pred_region
      %75 = dma.done [#allocation3], 128
    $region57: #{tpu_custom_call.1} parent=1 // pred_fallthru
      _
    // Predicated region
    $region58: #{tpu_custom_call.1} parent=1 // pred_check
      _
    $region59: #{tpu_custom_call.1} parent=1 // pred_check_branch
      %77 = sbr.rel (0) target = $region61
    $region60: #{tpu_custom_call.1} parent=1 // pred_region
      %78 = dma.done [#allocation6], 1024
    $region61: #{tpu_custom_call.1} parent=1 // pred_fallthru
      _
    // Predicated region
    $region62: #{tpu_custom_call.1} parent=1 // pred_check
      _
    $region63: #{tpu_custom_call.1} parent=1 // pred_check_branch
      %80 = sbr.rel (0) target = $region65
    $region64: #{tpu_custom_call.1} parent=1 // pred_region
      %81 = dma.done [#allocation6], 16
    $region65: #{tpu_custom_call.1} parent=1 // pred_fallthru
      _
    %v83 = vld [vmem:[#allocation2] sm:$0xff]
    %v84 = vpack.c.bf16 %v83, %v83
    %v85 = vld [vmem:[#allocation5] sm:$0xff]
    %v86 = vld [vmem:[#allocation5 + $0x8] sm:$0xff]
    %v87 = vld [vmem:[#allocation5 + $0x10] sm:$0xff]
    %v88 = vld [vmem:[#allocation5 + $0x18] sm:$0xff]
    %v89 = vld [vmem:[#allocation5 + $0x20] sm:$0xff]
    %v90 = vld [vmem:[#allocation5 + $0x28] sm:$0xff]
    %v91 = vld [vmem:[#allocation5 + $0x30] sm:$0xff]
    %v92 = vld [vmem:[#allocation5 + $0x38] sm:$0xff]
    %v93 = vld [vmem:[%s2] sm:$0x3]
    %v95 = vlaneseq
    %v96 = vshrl.u32 %v95, 7
    %v97 = vsub.s32 0, %v96
    %v98 = vrot.slane %v93, %v97
    %v99 = vlaneseq
    %v100 = vshrl.u32 %v99, 7
    %v101 = vsub.s32 1, %v100
    %v102 = vrot.slane %v93, %v101
    %v113 = vunpack.c.l.b16 %v85
    %v114 = vunpack.c.h.b16 %v85
    %v115 = vunpack.c.l.b16 %v86
    %v116 = vunpack.c.h.b16 %v86
    %v117 = vunpack.c.l.b16 %v87
    %v118 = vunpack.c.h.b16 %v87
    %v119 = vunpack.c.l.b16 %v88
    %v120 = vunpack.c.h.b16 %v88
    %v121 = vunpack.c.l.b16 %v89
    %v122 = vunpack.c.h.b16 %v89
    %v123 = vunpack.c.l.b16 %v90
    %v124 = vunpack.c.h.b16 %v90
    %v125 = vunpack.c.l.b16 %v91
    %v126 = vunpack.c.h.b16 %v91
    %v127 = vunpack.c.l.b16 %v92
    %v128 = vunpack.c.h.b16 %v92
    %v129 = vpack.c.b16 %v115, %v113
    %v130 = vpack.c.b16 %v116, %v114
    %v131 = vpack.c.b16 %v119, %v117
    %v132 = vpack.c.b16 %v120, %v118
    %v133 = vpack.c.b16 %v123, %v121
    %v134 = vpack.c.b16 %v124, %v122
    %v135 = vpack.c.b16 %v127, %v125
    %v136 = vpack.c.b16 %v128, %v126
    %vm145 = vcmask 523264
    %v147 = vsel %vm145, %v84, 0
    %149 = vmatprep.subr.bf16.mxu0 %v130
    %150 = vmatpush1.bf16.msra.mxu0 %v129
    %151 = vmatprep.subr.bf16.mxu0 %v132
    %152 = vmatpush1.bf16.msra.mxu0 %v131
    %153 = vmatprep.subr.bf16.mxu0 %v134
    %154 = vmatpush1.bf16.msra.mxu0 %v133
    %155 = vmatprep.subr.bf16.mxu0 %v136
    %156 = vmatpush1.bf16.msra.mxu0 %v135
    %157 = vmatprep.subr.bf16.mxu0 0
    %158 = vmatpush1.bf16.msra.mxu0 0
    %159 = vmatprep.subr.bf16.mxu0 0
    %160 = vmatpush1.bf16.msra.mxu0 0
    %161 = vmatprep.subr.bf16.mxu0 0
    %162 = vmatpush1.bf16.msra.mxu0 0
    %163 = vmatprep.subr.bf16.mxu0 0
    %164 = vmatpush1.bf16.msra.mxu0 0
    %165 = vmatprep.subr.bf16.mxu0 0
    %166 = vmatpush1.bf16.msra.mxu0 0
    %167 = vmatprep.subr.bf16.mxu0 0
    %168 = vmatpush1.bf16.msra.mxu0 0
    %169 = vmatprep.subr.bf16.mxu0 0
    %170 = vmatpush1.bf16.msra.mxu0 0
    %171 = vmatprep.subr.bf16.mxu0 0
    %172 = vmatpush1.bf16.msra.mxu0 0
    %173 = vmatprep.subr.bf16.mxu0 0
    %174 = vmatpush1.bf16.msra.mxu0 0
    %175 = vmatprep.subr.bf16.mxu0 0
    %176 = vmatpush1.bf16.msra.mxu0 0
    %177 = vmatprep.subr.bf16.mxu0 0
    %178 = vmatpush1.bf16.msra.mxu0 0
    %179 = vmatprep.subr.bf16.mxu0 0
    %180 = vmatpush1.bf16.msra.mxu0 0
    %181 = vmatprep.mubr.bf16.mxu0 0
    %182 = vmatmul.mubr.bf16.gmra.mrb[0].mxu0 %v147
    %v183 = vpop.f32.mrb[0].mxu0
    %v184 = vadd.f32 %v98, %v183
    %v185 = vpop.f32.mrb[0].mxu0
    %v186 = vadd.f32 %v102, %v185
    %v187 = vpop.f32.mrb[0].mxu0
    %v188 = vpop.f32.mrb[0].mxu0
    %189 = vdwg.mxu0
    %v190 = vmax.f32 %v184, 0.0
    %v191 = vmax.f32 %v186, 0.0
    %v192 = vpack.c.bf16 %v190, %v190
    %v193 = vpack.c.bf16 %v191, %v191
    %v194 = vld [vmem:[%s3] sm:$0xf]
    %v195 = vld [vmem:[%s3 + $0x4] sm:$0xf]
    %v196 = vld [vmem:[%s3 + $0x8] sm:$0xf]
    %v197 = vld [vmem:[%s3 + $0xc] sm:$0xf]
    %v198 = vld [vmem:[%s3 + $0x10] sm:$0xf]
    %v199 = vld [vmem:[%s3 + $0x14] sm:$0xf]
    %v200 = vld [vmem:[%s3 + $0x18] sm:$0xf]
    %v201 = vld [vmem:[%s3 + $0x1c] sm:$0xf]
    %v202 = vld [vmem:[%s3 + $0x20] sm:$0xf]
    %v203 = vld [vmem:[%s3 + $0x24] sm:$0xf]
    %v204 = vld [vmem:[%s3 + $0x28] sm:$0xf]
    %v205 = vld [vmem:[%s3 + $0x2c] sm:$0xf]
    %v206 = vld [vmem:[%s3 + $0x30] sm:$0xf]
    %v207 = vld [vmem:[%s3 + $0x34] sm:$0xf]
    %v208 = vld [vmem:[%s3 + $0x38] sm:$0xf]
    %v209 = vld [vmem:[%s3 + $0x3c] sm:$0xf]
    %v210 = vld [vmem:[%s3 + $0x40] sm:$0xf]
    %v211 = vld [vmem:[%s3 + $0x44] sm:$0xf]
    %v212 = vld [vmem:[%s3 + $0x48] sm:$0xf]
    %v213 = vld [vmem:[%s3 + $0x4c] sm:$0xf]
    %v214 = vld [vmem:[%s3 + $0x50] sm:$0xf]
    %v215 = vld [vmem:[%s3 + $0x54] sm:$0xf]
    %v216 = vld [vmem:[%s3 + $0x58] sm:$0xf]
    %v217 = vld [vmem:[%s3 + $0x5c] sm:$0xf]
    %v218 = vld [vmem:[%s3 + $0x60] sm:$0xf]
    %v219 = vld [vmem:[%s3 + $0x64] sm:$0xf]
    %v220 = vld [vmem:[%s3 + $0x68] sm:$0xf]
    %v221 = vld [vmem:[%s3 + $0x6c] sm:$0xf]
    %v222 = vld [vmem:[%s3 + $0x70] sm:$0xf]
    %v223 = vld [vmem:[%s3 + $0x74] sm:$0xf]
    %v224 = vld [vmem:[%s3 + $0x78] sm:$0xf]
    %v225 = vld [vmem:[%s3 + $0x7c] sm:$0xf]
    %v226 = vld [vmem:[#allocation7] sm:$0x1]
    %v228 = vlaneseq
    %v229 = vshrl.u32 %v228, 7
    %v230 = vsub.s32 0, %v229
    %v231 = vrot.slane %v226, %v230
    %v265 = vunpack.c.l.b16 %v194
    %v266 = vunpack.c.l.b16 %v195
    %v267 = vunpack.c.l.b16 %v196
    %v268 = vunpack.c.l.b16 %v197
    %v269 = vunpack.c.l.b16 %v198
    %v270 = vunpack.c.l.b16 %v199
    %v271 = vunpack.c.l.b16 %v200
    %v272 = vunpack.c.l.b16 %v201
    %v273 = vunpack.c.l.b16 %v202
    %v274 = vunpack.c.l.b16 %v203
    %v275 = vunpack.c.l.b16 %v204
    %v276 = vunpack.c.l.b16 %v205
    %v277 = vunpack.c.l.b16 %v206
    %v278 = vunpack.c.l.b16 %v207
    %v279 = vunpack.c.l.b16 %v208
    %v280 = vunpack.c.l.b16 %v209
    %v281 = vunpack.c.l.b16 %v210
    %v282 = vunpack.c.l.b16 %v211
    %v283 = vunpack.c.l.b16 %v212
    %v284 = vunpack.c.l.b16 %v213
    %v285 = vunpack.c.l.b16 %v214
    %v286 = vunpack.c.l.b16 %v215
    %v287 = vunpack.c.l.b16 %v216
    %v288 = vunpack.c.l.b16 %v217
    %v289 = vunpack.c.l.b16 %v218
    %v290 = vunpack.c.l.b16 %v219
    %v291 = vunpack.c.l.b16 %v220
    %v292 = vunpack.c.l.b16 %v221
    %v293 = vunpack.c.l.b16 %v222
    %v294 = vunpack.c.l.b16 %v223
    %v295 = vunpack.c.l.b16 %v224
    %v296 = vunpack.c.l.b16 %v225
    %v297 = vpack.c.b16 %v266, %v265
    %v298 = vpack.c.b16 %v268, %v267
    %v299 = vpack.c.b16 %v270, %v269
    %v300 = vpack.c.b16 %v272, %v271
    %v301 = vpack.c.b16 %v274, %v273
    %v302 = vpack.c.b16 %v276, %v275
    %v303 = vpack.c.b16 %v278, %v277
    %v304 = vpack.c.b16 %v280, %v279
    %v305 = vpack.c.b16 %v282, %v281
    %v306 = vpack.c.b16 %v284, %v283
    %v307 = vpack.c.b16 %v286, %v285
    %v308 = vpack.c.b16 %v288, %v287
    %v309 = vpack.c.b16 %v290, %v289
    %v310 = vpack.c.b16 %v292, %v291
    %v311 = vpack.c.b16 %v294, %v293
    %v312 = vpack.c.b16 %v296, %v295
    %329 = vmatprep.subr.bf16.mxu0 0
    %330 = vmatpush1.bf16.msra.mxu0 %v297
    %331 = vmatprep.subr.bf16.mxu0 0
    %332 = vmatpush1.bf16.msra.mxu0 %v298
    %333 = vmatprep.subr.bf16.mxu0 0
    %334 = vmatpush1.bf16.msra.mxu0 %v299
    %335 = vmatprep.subr.bf16.mxu0 0
    %336 = vmatpush1.bf16.msra.mxu0 %v300
    %337 = vmatprep.subr.bf16.mxu0 0
    %338 = vmatpush1.bf16.msra.mxu0 %v301
    %339 = vmatprep.subr.bf16.mxu0 0
    %340 = vmatpush1.bf16.msra.mxu0 %v302
    %341 = vmatprep.subr.bf16.mxu0 0
    %342 = vmatpush1.bf16.msra.mxu0 %v303
    %343 = vmatprep.subr.bf16.mxu0 0
    %344 = vmatpush1.bf16.msra.mxu0 %v304
    %345 = vmatprep.subr.bf16.mxu0 0
    %346 = vmatpush1.bf16.msra.mxu0 %v305
    %347 = vmatprep.subr.bf16.mxu0 0
    %348 = vmatpush1.bf16.msra.mxu0 %v306
    %349 = vmatprep.subr.bf16.mxu0 0
    %350 = vmatpush1.bf16.msra.mxu0 %v307
    %351 = vmatprep.subr.bf16.mxu0 0
    %352 = vmatpush1.bf16.msra.mxu0 %v308
    %353 = vmatprep.subr.bf16.mxu0 0
    %354 = vmatpush1.bf16.msra.mxu0 %v309
    %355 = vmatprep.subr.bf16.mxu0 0
    %356 = vmatpush1.bf16.msra.mxu0 %v310
    %357 = vmatprep.subr.bf16.mxu0 0
    %358 = vmatpush1.bf16.msra.mxu0 %v311
    %359 = vmatprep.subr.bf16.mxu0 0
    %360 = vmatpush1.bf16.msra.mxu0 %v312
    %361 = vmatprep.mubr.bf16.mxu0 %v193
    %362 = vmatmul.mubr.bf16.gmra.mrb[0].mxu0 %v192
    %v363 = vpop.f32.mrb[0].mxu0
    %v364 = vadd.f32 %v231, %v363
    %v365 = vpop.f32.mrb[0].mxu0
    %v366 = vpop.f32.mrb[0].mxu0
    %v367 = vpop.f32.mrb[0].mxu0
    %368 = vdwg.mxu0
    %v369 = vmax.f32 %v364, 0.0
    %v370 = vpack.c.bf16 %v369, %v369
    %v371 = vld [vmem:[%s5] sm:$0xf]
    %v372 = vld [vmem:[%s5 + $0x4] sm:$0xf]
    %v373 = vld [vmem:[%s5 + $0x8] sm:$0xf]
    %v374 = vld [vmem:[%s5 + $0xc] sm:$0xf]
    %v375 = vld [vmem:[%s5 + $0x10] sm:$0xf]
    %v376 = vld [vmem:[%s5 + $0x14] sm:$0xf]
    %v377 = vld [vmem:[%s5 + $0x18] sm:$0xf]
    %v378 = vld [vmem:[%s5 + $0x1c] sm:$0xf]
    %v379 = vld [vmem:[%s5 + $0x20] sm:$0xf]
    %v380 = vld [vmem:[%s5 + $0x24] sm:$0xf]
    %v381 = vld [vmem:[%s5 + $0x28] sm:$0xf]
    %v382 = vld [vmem:[%s5 + $0x2c] sm:$0xf]
    %v383 = vld [vmem:[%s5 + $0x30] sm:$0xf]
    %v384 = vld [vmem:[%s5 + $0x34] sm:$0xf]
    %v385 = vld [vmem:[%s5 + $0x38] sm:$0xf]
    %v386 = vld [vmem:[%s5 + $0x3c] sm:$0xf]
    %v387 = vld [vmem:[%s6] sm:$0x1]
    %v389 = vlaneseq
    %v390 = vshrl.u32 %v389, 7
    %v391 = vsub.s32 0, %v390
    %v392 = vrot.slane %v387, %v391
    %v410 = vunpack.c.l.b16 %v371
    %v411 = vunpack.c.l.b16 %v372
    %v412 = vunpack.c.l.b16 %v373
    %v413 = vunpack.c.l.b16 %v374
    %v414 = vunpack.c.l.b16 %v375
    %v415 = vunpack.c.l.b16 %v376
    %v416 = vunpack.c.l.b16 %v377
    %v417 = vunpack.c.l.b16 %v378
    %v418 = vunpack.c.l.b16 %v379
    %v419 = vunpack.c.l.b16 %v380
    %v420 = vunpack.c.l.b16 %v381
    %v421 = vunpack.c.l.b16 %v382
    %v422 = vunpack.c.l.b16 %v383
    %v423 = vunpack.c.l.b16 %v384
    %v424 = vunpack.c.l.b16 %v385
    %v425 = vunpack.c.l.b16 %v386
    %v426 = vpack.c.b16 %v411, %v410
    %v427 = vpack.c.b16 %v413, %v412
    %v428 = vpack.c.b16 %v415, %v414
    %v429 = vpack.c.b16 %v417, %v416
    %v430 = vpack.c.b16 %v419, %v418
    %v431 = vpack.c.b16 %v421, %v420
    %v432 = vpack.c.b16 %v423, %v422
    %v433 = vpack.c.b16 %v425, %v424
    %442 = vmatprep.subr.bf16.mxu0 0
    %443 = vmatpush1.bf16.msra.mxu0 %v426
    %444 = vmatprep.subr.bf16.mxu0 0
    %445 = vmatpush1.bf16.msra.mxu0 %v427
    %446 = vmatprep.subr.bf16.mxu0 0
    %447 = vmatpush1.bf16.msra.mxu0 %v428
    %448 = vmatprep.subr.bf16.mxu0 0
    %449 = vmatpush1.bf16.msra.mxu0 %v429
    %450 = vmatprep.subr.bf16.mxu0 0
    %451 = vmatpush1.bf16.msra.mxu0 %v430
    %452 = vmatprep.subr.bf16.mxu0 0
    %453 = vmatpush1.bf16.msra.mxu0 %v431
    %454 = vmatprep.subr.bf16.mxu0 0
    %455 = vmatpush1.bf16.msra.mxu0 %v432
    %456 = vmatprep.subr.bf16.mxu0 0
    %457 = vmatpush1.bf16.msra.mxu0 %v433
    %458 = vmatprep.subr.bf16.mxu0 0
    %459 = vmatpush1.bf16.msra.mxu0 0
    %460 = vmatprep.subr.bf16.mxu0 0
    %461 = vmatpush1.bf16.msra.mxu0 0
    %462 = vmatprep.subr.bf16.mxu0 0
    %463 = vmatpush1.bf16.msra.mxu0 0
    %464 = vmatprep.subr.bf16.mxu0 0
    %465 = vmatpush1.bf16.msra.mxu0 0
    %466 = vmatprep.subr.bf16.mxu0 0
    %467 = vmatpush1.bf16.msra.mxu0 0
    %468 = vmatprep.subr.bf16.mxu0 0
    %469 = vmatpush1.bf16.msra.mxu0 0
    %470 = vmatprep.subr.bf16.mxu0 0
    %471 = vmatpush1.bf16.msra.mxu0 0
    %472 = vmatprep.subr.bf16.mxu0 0
    %473 = vmatpush1.bf16.msra.mxu0 0
    %474 = vmatprep.mubr.bf16.mxu0 0
    %475 = vmatmul.mubr.bf16.gmra.mrb[0].mxu0 %v370
    %v476 = vpop.f32.mrb[0].mxu0
    %v477 = vadd.f32 %v392, %v476
    %v478 = vpop.f32.mrb[0].mxu0
    %v479 = vpop.f32.mrb[0].mxu0
    %v480 = vpop.f32.mrb[0].mxu0
    %481 = vdwg.mxu0
    %v482 = vmax.f32 %v477, 0.0
    %v483 = vpack.c.bf16 %v482, %v482
    %v484 = vld [vmem:[%s7] sm:$0xf]
    %v485 = vld [vmem:[%s7 + $0x4] sm:$0xf]
    %v486 = vld [vmem:[%s7 + $0x8] sm:$0xf]
    %v487 = vld [vmem:[%s7 + $0xc] sm:$0xf]
    %v488 = vld [vmem:[%s8] sm:$0x1]
    %v490 = vlaneseq
    %v491 = vshrl.u32 %v490, 7
    %v492 = vsub.s32 0, %v491
    %v493 = vrot.slane %v488, %v492
    %v499 = vunpack.c.l.b16 %v484
    %v500 = vunpack.c.l.b16 %v485
    %v501 = vunpack.c.l.b16 %v486
    %v502 = vunpack.c.l.b16 %v487
    %v503 = vpack.c.b16 %v500, %v499
    %v504 = vpack.c.b16 %v502, %v501
    %vm507 = vcmask 261120
    %v509 = vsel %vm507, %v483, 0
    %511 = vmatprep.subr.bf16.mxu0 0
    %512 = vmatpush1.bf16.msra.mxu0 %v503
    %513 = vmatprep.subr.bf16.mxu0 0
    %514 = vmatpush1.bf16.msra.mxu0 %v504
    %515 = vmatprep.subr.bf16.mxu0 0
    %516 = vmatpush1.bf16.msra.mxu0 0
    %517 = vmatprep.subr.bf16.mxu0 0
    %518 = vmatpush1.bf16.msra.mxu0 0
    %519 = vmatprep.subr.bf16.mxu0 0
    %520 = vmatpush1.bf16.msra.mxu0 0
    %521 = vmatprep.subr.bf16.mxu0 0
    %522 = vmatpush1.bf16.msra.mxu0 0
    %523 = vmatprep.subr.bf16.mxu0 0
    %524 = vmatpush1.bf16.msra.mxu0 0
    %525 = vmatprep.subr.bf16.mxu0 0
    %526 = vmatpush1.bf16.msra.mxu0 0
    %527 = vmatprep.subr.bf16.mxu0 0
    %528 = vmatpush1.bf16.msra.mxu0 0
    %529 = vmatprep.subr.bf16.mxu0 0
    %530 = vmatpush1.bf16.msra.mxu0 0
    %531 = vmatprep.subr.bf16.mxu0 0
    %532 = vmatpush1.bf16.msra.mxu0 0
    %533 = vmatprep.subr.bf16.mxu0 0
    %534 = vmatpush1.bf16.msra.mxu0 0
    %535 = vmatprep.subr.bf16.mxu0 0
    %536 = vmatpush1.bf16.msra.mxu0 0
    %537 = vmatprep.subr.bf16.mxu0 0
    %538 = vmatpush1.bf16.msra.mxu0 0
    %539 = vmatprep.subr.bf16.mxu0 0
    %540 = vmatpush1.bf16.msra.mxu0 0
    %541 = vmatprep.subr.bf16.mxu0 0
    %542 = vmatpush1.bf16.msra.mxu0 0
    %543 = vmatprep.mubr.bf16.mxu0 0
    %544 = vmatmul.mubr.bf16.gmra.mrb[0].mxu0 %v509
    %v545 = vpop.f32.mrb[0].mxu0
    %v546 = vadd.f32 %v493, %v545
    %v547 = vpop.f32.mrb[0].mxu0
    %v548 = vpop.f32.mrb[0].mxu0
    %v549 = vpop.f32.mrb[0].mxu0
    %550 = vdwg.mxu0
    %v551 = vmax.f32 %v546, 0.0
    %v552 = vpack.c.bf16 %v551, %v551
    %v553 = vld [vmem:[%s9] sm:$0xff]
    %v554 = vld [vmem:[%s9 + $0x8] sm:$0xff]
    %v555 = vld [vmem:[%s9 + $0x10] sm:$0xff]
    %v556 = vld [vmem:[%s9 + $0x18] sm:$0xff]
    %v557 = vld [vmem:[%s9 + $0x20] sm:$0xff]
    %v558 = vld [vmem:[%s9 + $0x28] sm:$0xff]
    %v559 = vld [vmem:[%s9 + $0x30] sm:$0xff]
    %v560 = vld [vmem:[%s9 + $0x38] sm:$0xff]
    %v561 = vld [vmem:[%s9 + $0x40] sm:$0xff]
    %v562 = vld [vmem:[%s9 + $0x48] sm:$0xff]
    %v563 = vld [vmem:[%s9 + $0x50] sm:$0xff]
    %v564 = vld [vmem:[%s9 + $0x58] sm:$0xff]
    %v565 = vld [vmem:[%s9 + $0x60] sm:$0xff]
    %v566 = vld [vmem:[%s9 + $0x68] sm:$0xff]
    %v567 = vld [vmem:[%s9 + $0x70] sm:$0xff]
    %v568 = vld [vmem:[%s9 + $0x78] sm:$0xff]
    %v569 = vld [vmem:[%s10] sm:$0x3]
    %v571 = vlaneseq
    %v572 = vshrl.u32 %v571, 7
    %v573 = vsub.s32 0, %v572
    %v574 = vrot.slane %v569, %v573
    %v575 = vlaneseq
    %v576 = vshrl.u32 %v575, 7
    %v577 = vsub.s32 1, %v576
    %v578 = vrot.slane %v569, %v577
    %v597 = vunpack.c.l.b16 %v553
    %v598 = vunpack.c.h.b16 %v553
    %v599 = vunpack.c.l.b16 %v554
    %v600 = vunpack.c.h.b16 %v554
    %v601 = vunpack.c.l.b16 %v555
    %v602 = vunpack.c.h.b16 %v555
    %v603 = vunpack.c.l.b16 %v556
    %v604 = vunpack.c.h.b16 %v556
    %v605 = vunpack.c.l.b16 %v557
    %v606 = vunpack.c.h.b16 %v557
    %v607 = vunpack.c.l.b16 %v558
    %v608 = vunpack.c.h.b16 %v558
    %v609 = vunpack.c.l.b16 %v559
    %v610 = vunpack.c.h.b16 %v559
    %v611 = vunpack.c.l.b16 %v560
    %v612 = vunpack.c.h.b16 %v560
    %v613 = vunpack.c.l.b16 %v561
    %v614 = vunpack.c.h.b16 %v561
    %v615 = vunpack.c.l.b16 %v562
    %v616 = vunpack.c.h.b16 %v562
    %v617 = vunpack.c.l.b16 %v563
    %v618 = vunpack.c.h.b16 %v563
    %v619 = vunpack.c.l.b16 %v564
    %v620 = vunpack.c.h.b16 %v564
    %v621 = vunpack.c.l.b16 %v565
    %v622 = vunpack.c.h.b16 %v565
    %v623 = vunpack.c.l.b16 %v566
    %v624 = vunpack.c.h.b16 %v566
    %v625 = vunpack.c.l.b16 %v567
    %v626 = vunpack.c.h.b16 %v567
    %v627 = vunpack.c.l.b16 %v568
    %v628 = vunpack.c.h.b16 %v568
    %v629 = vpack.c.b16 %v599, %v597
    %v630 = vpack.c.b16 %v600, %v598
    %v631 = vpack.c.b16 %v603, %v601
    %v632 = vpack.c.b16 %v604, %v602
    %v633 = vpack.c.b16 %v607, %v605
    %v634 = vpack.c.b16 %v608, %v606
    %v635 = vpack.c.b16 %v611, %v609
    %v636 = vpack.c.b16 %v612, %v610
    %v637 = vpack.c.b16 %v615, %v613
    %v638 = vpack.c.b16 %v616, %v614
    %v639 = vpack.c.b16 %v619, %v617
    %v640 = vpack.c.b16 %v620, %v618
    %v641 = vpack.c.b16 %v623, %v621
    %v642 = vpack.c.b16 %v624, %v622
    %v643 = vpack.c.b16 %v627, %v625
    %v644 = vpack.c.b16 %v628, %v626
    %661 = vmatprep.subr.bf16.mxu0 %v630
    %662 = vmatpush1.bf16.msra.mxu0 %v629
    %663 = vmatprep.subr.bf16.mxu0 %v632
    %664 = vmatpush1.bf16.msra.mxu0 %v631
    %665 = vmatprep.subr.bf16.mxu0 %v634
    %666 = vmatpush1.bf16.msra.mxu0 %v633
    %667 = vmatprep.subr.bf16.mxu0 %v636
    %668 = vmatpush1.bf16.msra.mxu0 %v635
    %669 = vmatprep.subr.bf16.mxu0 %v638
    %670 = vmatpush1.bf16.msra.mxu0 %v637
    %671 = vmatprep.subr.bf16.mxu0 %v640
    %672 = vmatpush1.bf16.msra.mxu0 %v639
    %673 = vmatprep.subr.bf16.mxu0 %v642
    %674 = vmatpush1.bf16.msra.mxu0 %v641
    %675 = vmatprep.subr.bf16.mxu0 %v644
    %676 = vmatpush1.bf16.msra.mxu0 %v643
    %677 = vmatprep.subr.bf16.mxu0 0
    %678 = vmatpush1.bf16.msra.mxu0 0
    %679 = vmatprep.subr.bf16.mxu0 0
    %680 = vmatpush1.bf16.msra.mxu0 0
    %681 = vmatprep.subr.bf16.mxu0 0
    %682 = vmatpush1.bf16.msra.mxu0 0
    %683 = vmatprep.subr.bf16.mxu0 0
    %684 = vmatpush1.bf16.msra.mxu0 0
    %685 = vmatprep.subr.bf16.mxu0 0
    %686 = vmatpush1.bf16.msra.mxu0 0
    %687 = vmatprep.subr.bf16.mxu0 0
    %688 = vmatpush1.bf16.msra.mxu0 0
    %689 = vmatprep.subr.bf16.mxu0 0
    %690 = vmatpush1.bf16.msra.mxu0 0
    %691 = vmatprep.subr.bf16.mxu0 0
    %692 = vmatpush1.bf16.msra.mxu0 0
    %693 = vmatprep.mubr.bf16.mxu0 0
    %694 = vmatmul.mubr.bf16.gmra.mrb[0].mxu0 %v552
    %v695 = vpop.f32.mrb[0].mxu0
    %v696 = vadd.f32 %v574, %v695
    %v697 = vpop.f32.mrb[0].mxu0
    %v698 = vadd.f32 %v578, %v697
    %v699 = vpop.f32.mrb[0].mxu0
    %v700 = vpop.f32.mrb[0].mxu0
    %701 = vdwg.mxu0
    %v702 = vmax.f32 %v696, 0.0
    %v703 = vmax.f32 %v698, 0.0
    %v704 = vpack.c.bf16 %v702, %v702
    %v705 = vpack.c.bf16 %v703, %v703
    %v706 = vld [vmem:[%s11] sm:$0xf]
    %v707 = vld [vmem:[%s11 + $0x4] sm:$0xf]
    %v708 = vld [vmem:[%s11 + $0x8] sm:$0xf]
    %v709 = vld [vmem:[%s11 + $0xc] sm:$0xf]
    %v710 = vld [vmem:[%s11 + $0x10] sm:$0xf]
    %v711 = vld [vmem:[%s11 + $0x14] sm:$0xf]
    %v712 = vld [vmem:[%s11 + $0x18] sm:$0xf]
    %v713 = vld [vmem:[%s11 + $0x1c] sm:$0xf]
    %v714 = vld [vmem:[%s11 + $0x20] sm:$0xf]
    %v715 = vld [vmem:[%s11 + $0x24] sm:$0xf]
    %v716 = vld [vmem:[%s11 + $0x28] sm:$0xf]
    %v717 = vld [vmem:[%s11 + $0x2c] sm:$0xf]
    %v718 = vld [vmem:[%s11 + $0x30] sm:$0xf]
    %v719 = vld [vmem:[%s11 + $0x34] sm:$0xf]
    %v720 = vld [vmem:[%s11 + $0x38] sm:$0xf]
    %v721 = vld [vmem:[%s11 + $0x3c] sm:$0xf]
    %v722 = vld [vmem:[%s11 + $0x40] sm:$0xf]
    %v723 = vld [vmem:[%s11 + $0x44] sm:$0xf]
    %v724 = vld [vmem:[%s11 + $0x48] sm:$0xf]
    %v725 = vld [vmem:[%s11 + $0x4c] sm:$0xf]
    %v726 = vld [vmem:[%s11 + $0x50] sm:$0xf]
    %v727 = vld [vmem:[%s11 + $0x54] sm:$0xf]
    %v728 = vld [vmem:[%s11 + $0x58] sm:$0xf]
    %v729 = vld [vmem:[%s11 + $0x5c] sm:$0xf]
    %v730 = vld [vmem:[%s11 + $0x60] sm:$0xf]
    %v731 = vld [vmem:[%s11 + $0x64] sm:$0xf]
    %v732 = vld [vmem:[%s11 + $0x68] sm:$0xf]
    %v733 = vld [vmem:[%s11 + $0x6c] sm:$0xf]
    %v734 = vld [vmem:[%s11 + $0x70] sm:$0xf]
    %v735 = vld [vmem:[%s11 + $0x74] sm:$0xf]
    %v736 = vld [vmem:[%s11 + $0x78] sm:$0xf]
    %v737 = vld [vmem:[%s11 + $0x7c] sm:$0xf]
    %v738 = vld [vmem:[%s12] sm:$0x1]
    %v740 = vlaneseq
    %v741 = vshrl.u32 %v740, 7
    %v742 = vsub.s32 0, %v741
    %v743 = vrot.slane %v738, %v742
    %v777 = vunpack.c.l.b16 %v706
    %v778 = vunpack.c.l.b16 %v707
    %v779 = vunpack.c.l.b16 %v708
    %v780 = vunpack.c.l.b16 %v709
    %v781 = vunpack.c.l.b16 %v710
    %v782 = vunpack.c.l.b16 %v711
    %v783 = vunpack.c.l.b16 %v712
    %v784 = vunpack.c.l.b16 %v713
    %v785 = vunpack.c.l.b16 %v714
    %v786 = vunpack.c.l.b16 %v715
    %v787 = vunpack.c.l.b16 %v716
    %v788 = vunpack.c.l.b16 %v717
    %v789 = vunpack.c.l.b16 %v718
    %v790 = vunpack.c.l.b16 %v719
    %v791 = vunpack.c.l.b16 %v720
    %v792 = vunpack.c.l.b16 %v721
    %v793 = vunpack.c.l.b16 %v722
    %v794 = vunpack.c.l.b16 %v723
    %v795 = vunpack.c.l.b16 %v724
    %v796 = vunpack.c.l.b16 %v725
    %v797 = vunpack.c.l.b16 %v726
    %v798 = vunpack.c.l.b16 %v727
    %v799 = vunpack.c.l.b16 %v728
    %v800 = vunpack.c.l.b16 %v729
    %v801 = vunpack.c.l.b16 %v730
    %v802 = vunpack.c.l.b16 %v731
    %v803 = vunpack.c.l.b16 %v732
    %v804 = vunpack.c.l.b16 %v733
    %v805 = vunpack.c.l.b16 %v734
    %v806 = vunpack.c.l.b16 %v735
    %v807 = vunpack.c.l.b16 %v736
    %v808 = vunpack.c.l.b16 %v737
    %v809 = vpack.c.b16 %v778, %v777
    %v810 = vpack.c.b16 %v780, %v779
    %v811 = vpack.c.b16 %v782, %v781
    %v812 = vpack.c.b16 %v784, %v783
    %v813 = vpack.c.b16 %v786, %v785
    %v814 = vpack.c.b16 %v788, %v787
    %v815 = vpack.c.b16 %v790, %v789
    %v816 = vpack.c.b16 %v792, %v791
    %v817 = vpack.c.b16 %v794, %v793
    %v818 = vpack.c.b16 %v796, %v795
    %v819 = vpack.c.b16 %v798, %v797
    %v820 = vpack.c.b16 %v800, %v799
    %v821 = vpack.c.b16 %v802, %v801
    %v822 = vpack.c.b16 %v804, %v803
    %v823 = vpack.c.b16 %v806, %v805
    %v824 = vpack.c.b16 %v808, %v807
    %841 = vmatprep.subr.bf16.mxu0 0
    %842 = vmatpush1.bf16.msra.mxu0 %v809
    %843 = vmatprep.subr.bf16.mxu0 0
    %844 = vmatpush1.bf16.msra.mxu0 %v810
    %845 = vmatprep.subr.bf16.mxu0 0
    %846 = vmatpush1.bf16.msra.mxu0 %v811
    %847 = vmatprep.subr.bf16.mxu0 0
    %848 = vmatpush1.bf16.msra.mxu0 %v812
    %849 = vmatprep.subr.bf16.mxu0 0
    %850 = vmatpush1.bf16.msra.mxu0 %v813
    %851 = vmatprep.subr.bf16.mxu0 0
    %852 = vmatpush1.bf16.msra.mxu0 %v814
    %853 = vmatprep.subr.bf16.mxu0 0
    %854 = vmatpush1.bf16.msra.mxu0 %v815
    %855 = vmatprep.subr.bf16.mxu0 0
    %856 = vmatpush1.bf16.msra.mxu0 %v816
    %857 = vmatprep.subr.bf16.mxu0 0
    %858 = vmatpush1.bf16.msra.mxu0 %v817
    %859 = vmatprep.subr.bf16.mxu0 0
    %860 = vmatpush1.bf16.msra.mxu0 %v818
    %861 = vmatprep.subr.bf16.mxu0 0
    %862 = vmatpush1.bf16.msra.mxu0 %v819
    %863 = vmatprep.subr.bf16.mxu0 0
    %864 = vmatpush1.bf16.msra.mxu0 %v820
    %865 = vmatprep.subr.bf16.mxu0 0
    %866 = vmatpush1.bf16.msra.mxu0 %v821
    %867 = vmatprep.subr.bf16.mxu0 0
    %868 = vmatpush1.bf16.msra.mxu0 %v822
    %869 = vmatprep.subr.bf16.mxu0 0
    %870 = vmatpush1.bf16.msra.mxu0 %v823
    %871 = vmatprep.subr.bf16.mxu0 0
    %872 = vmatpush1.bf16.msra.mxu0 %v824
    %873 = vmatprep.mubr.bf16.mxu0 %v705
    %874 = vmatmul.mubr.bf16.gmra.mrb[0].mxu0 %v704
    %v875 = vpop.f32.mrb[0].mxu0
    %v876 = vadd.f32 %v743, %v875
    %v877 = vpop.f32.mrb[0].mxu0
    %v878 = vpop.f32.mrb[0].mxu0
    %v879 = vpop.f32.mrb[0].mxu0
    %880 = vdwg.mxu0
    %881 = vst.msk [vmem:[#allocation8] sm:$0xff] %vm145, %v876
    // Predicated region
    $region66: #{tpu_custom_call.1} parent=1 // pred_check
      _
    $region67: #{tpu_custom_call.1} parent=1 // pred_check_branch
      %883 = sbr.rel (0) target = $region69
    $region68: #{tpu_custom_call.1} parent=1 // pred_region
      %s885 = ssub.s32 128, 128
      %886 = vsyncadd [#allocation4], %s885
      %s888 = sshll.u32 [#allocation8], 4
      %s889 = int_to_ptr.vmem [resolvable:$true] %s888
      %891 = dma.vmem_to_hbm [thread:$0]  %s889, 128, %s13, [#allocation4]
    $region69: #{tpu_custom_call.1} parent=1 // pred_fallthru
      _
    // Predicated region
    $region70: #{tpu_custom_call.1} parent=1 // pred_check
      _
    $region71: #{tpu_custom_call.1} parent=1 // pred_check_branch
      %893 = sbr.rel (0) target = $region73
    $region72: #{tpu_custom_call.1} parent=1 // pred_region
      %894 = dma.done [#allocation4], 128
    $region73: #{tpu_custom_call.1} parent=1 // pred_fallthru
      _
    %895 = vsyncpa [#allocation3], 1
    %896 = vsyncpa [#allocation6], 1
    %897 = vsyncpa [#allocation4], 1

</llo_original>
